<compile_context>
chip_gen: v7x
topology: tpu7x:2x2x1
jax: 0.10.0
libtpu: 0.0.40
codegen_flags: <defaults>
</compile_context>

<pallas_src>
import functools

import jax
import jax.numpy as jnp
import numpy as np
from jax import lax
from jax.experimental import pallas as pl
from jax.experimental.pallas import tpu as pltpu


# ----------------------------------------------------------------------------
# Kernel factory: one grid step = (batch block i, layer l).
# ----------------------------------------------------------------------------
def make_stack_kernel(block_b, n, dim, heads, dim_head, mlp_dim, ffn_chunk):
    inner = heads * dim_head
    eps = 1e-5
    inv_sqrt2 = 0.7071067811865476
    bf16 = jnp.bfloat16

    def kernel(x_ref,
               ln1w_ref, ln1b_ref,
               wqkv_ref, wout_ref, bout_ref,
               ln2w_ref, ln2b_ref,
               w1_ref, b1_ref, w2_ref, b2_ref,
               o_ref,
               x_scr, qkv_scr, attn_scr):
        layer = pl.program_id(1)

        # Load the batch block into the resident activation scratch once; it
        # then stays in VMEM across the whole depth loop.
        @pl.when(layer == 0)
        def _():
            x_scr[...] = x_ref[0]

        x = x_scr[...]                                   # (rows, dim) f32

        # ---- LayerNorm 1 (f32, VPU) --------------------------------------
        mu = jnp.mean(x, axis=-1, keepdims=True)
        var = jnp.mean((x - mu) ** 2, axis=-1, keepdims=True)
        xn = (x - mu) * lax.rsqrt(var + eps)
        xn = xn * ln1w_ref[0] + ln1b_ref[0]

        # ---- Fused QKV projection -> bf16 VMEM scratch --------------------
        # (softmax scale is pre-folded into the Q columns of wqkv)
        qkv_scr[...] = jnp.dot(
            xn.astype(bf16), wqkv_ref[0],
            preferred_element_type=jnp.float32).astype(bf16)

        # ---- Per-(batch, head) softmax attention --------------------------
        # q/k/v are static windowed loads from the bf16 scratch; head outputs
        # are concatenated per batch element and stored lane-dense.
        # TODO(synk): for very large block_b * heads, switch the batch loop to
        # lax.fori_loop to bound vreg live ranges.
        for bi in range(block_b):
            r0 = bi * n
            head_outs = []
            for hh in range(heads):
                c0 = hh * dim_head
                q = qkv_scr[r0:r0 + n, c0:c0 + dim_head]
                k = qkv_scr[r0:r0 + n, inner + c0:inner + c0 + dim_head]
                v = qkv_scr[r0:r0 + n,
                            2 * inner + c0:2 * inner + c0 + dim_head]
                # Contract last dims directly: no explicit k.T relayout.
                dots = lax.dot_general(
                    q, k, (((1,), (1,)), ((), ())),
                    preferred_element_type=jnp.float32)
                dots = dots - jnp.max(dots, axis=-1, keepdims=True)
                e = jnp.exp(dots)
                attn = e * pl.reciprocal(
                    jnp.sum(e, axis=-1, keepdims=True), approx=True)
                head_outs.append(
                    jnp.dot(attn.astype(bf16), v,
                            preferred_element_type=jnp.float32).astype(bf16))
            attn_scr[r0:r0 + n, :] = jnp.concatenate(head_outs, axis=-1)

        # ---- Output projection (single K=inner matmul) + residual 1 -------
        attn_out = jnp.dot(attn_scr[...], wout_ref[0],
                           preferred_element_type=jnp.float32) + bout_ref[0]
        x = x + attn_out

        # ---- LayerNorm 2 ---------------------------------------------------
        mu2 = jnp.mean(x, axis=-1, keepdims=True)
        var2 = jnp.mean((x - mu2) ** 2, axis=-1, keepdims=True)
        xn2 = ((x - mu2) * lax.rsqrt(var2 + eps)
               * ln2w_ref[0] + ln2b_ref[0]).astype(bf16)

        # ---- FeedForward: Linear -> GELU(exact) -> Linear, chunked over
        #      mlp_dim; residual and second bias folded into the accumulator.
        x_scr[...] = x + b2_ref[0]
        w1_v = w1_ref.at[0]                              # (dim, mlp) ref view
        w2_v = w2_ref.at[0]                              # (mlp, dim) ref view
        b1_row = b1_ref[0]                               # (1, mlp) f32
        for c0 in range(0, mlp_dim, ffn_chunk):
            h1 = jnp.dot(xn2, w1_v[:, c0:c0 + ffn_chunk],
                         preferred_element_type=jnp.float32)
            h1 = h1 + b1_row[:, c0:c0 + ffn_chunk]
            h1 = 0.5 * h1 * (1.0 + lax.erf(h1 * inv_sqrt2))
            x_scr[...] += jnp.dot(h1.astype(bf16),
                                  w2_v[c0:c0 + ffn_chunk, :],
                                  preferred_element_type=jnp.float32)

        # ---- Emit the batch block after the last layer ---------------------
        @pl.when(layer == pl.num_programs(1) - 1)
        def _():
            o_ref[0] = x_scr[...].astype(o_ref.dtype)

    return kernel


# ----------------------------------------------------------------------------
# Generation-aware sizing helpers.
# ----------------------------------------------------------------------------
def _physical_vmem_bytes():
    try:
        return int(pltpu.get_tpu_info().vmem_capacity_bytes)
    except Exception:
        return 64 << 20            # conservative: v7x per-TensorCore VMEM


def _choose_block_b(b, n, max_rows=512):
    """Pack batch elements per grid step to fill the MXU M dimension.
    Bigger is better on 1-TC chips (v5e/v6e); on 2-TC chips (v7x) callers can
    pass block_b explicitly to keep >= 2 parallel batch blocks."""
    bb = 1
    for cand in range(1, b + 1):
        if b % cand == 0 and cand * n <= max_rows:
            bb = cand
    return bb


def _choose_ffn_chunk(mlp_dim, cap=1024):
    if mlp_dim <= cap:
        return mlp_dim
    for c in range(cap, 127, -128):
        if mlp_dim % c == 0:
            return c
    return mlp_dim


def _vmem_limit_bytes(params, depth, rows, dim, inner, mlp_dim, ffn_chunk):
    layer_w = sum(int(a.size) * a.dtype.itemsize
                  for a in params.values()) // depth
    io_blocks = 2 * 2 * rows * dim * 4                 # x & out blocks, 2 bufs
    scratch = rows * dim * 4 + rows * 3 * inner * 2 + rows * inner * 2
    live = rows * (3 * inner + 2 * ffn_chunk + 4 * dim) * 4
    need = 2 * layer_w + io_blocks + scratch + live + (4 << 20)
    phys = _physical_vmem_bytes()
    return int(min(max(need, 32 << 20), phys - (8 << 20)))


# ----------------------------------------------------------------------------
# Whole-stack forward: one pallas_call, grid = (batch_blocks, depth).
# ----------------------------------------------------------------------------
def transformer_forward(x, params, *, heads, dim_head, mlp_dim, block_b=None):
    b, n, dim = x.shape
    inner = heads * dim_head
    assert dim == inner, "dim must equal heads * dim_head"
    depth = params["wqkv"].shape[0]

    bb = block_b if block_b is not None else _choose_block_b(b, n)
    assert b % bb == 0
    rows = bb * n
    nb = b // bb
    ffn_chunk = _choose_ffn_chunk(mlp_dim)

    kernel = make_stack_kernel(bb, n, dim, heads, dim_head, mlp_dim, ffn_chunk)
    x3 = x.reshape(nb, rows, dim)

    def xmap(i, l):      # activation blocks: indexed by the batch axis
        return (i, 0, 0)

    def wmap(i, l):      # weight blocks: indexed by the layer axis (prefetch)
        return (l, 0, 0)

    in_specs = [
        pl.BlockSpec((1, rows, dim), xmap),               # x
        pl.BlockSpec((1, 1, dim), wmap),                  # ln1w
        pl.BlockSpec((1, 1, dim), wmap),                  # ln1b
        pl.BlockSpec((1, dim, 3 * inner), wmap),          # wqkv
        pl.BlockSpec((1, inner, dim), wmap),              # wout
        pl.BlockSpec((1, 1, dim), wmap),                  # bout
        pl.BlockSpec((1, 1, dim), wmap),                  # ln2w
        pl.BlockSpec((1, 1, dim), wmap),                  # ln2b
        pl.BlockSpec((1, dim, mlp_dim), wmap),            # w1
        pl.BlockSpec((1, 1, mlp_dim), wmap),              # b1
        pl.BlockSpec((1, mlp_dim, dim), wmap),            # w2
        pl.BlockSpec((1, 1, dim), wmap),                  # b2
    ]

    out = pl.pallas_call(
        kernel,
        out_shape=jax.ShapeDtypeStruct((nb, rows, dim), x.dtype),
        grid=(nb, depth),
        in_specs=in_specs,
        out_specs=pl.BlockSpec((1, rows, dim), xmap),
        scratch_shapes=[
            pltpu.VMEM((rows, dim), jnp.float32),         # resident activations
            pltpu.VMEM((rows, 3 * inner), jnp.bfloat16),  # fused qkv
            pltpu.VMEM((rows, inner), jnp.bfloat16),      # concat head outputs
        ],
        compiler_params=pltpu.CompilerParams(
            dimension_semantics=("parallel", "arbitrary"),
            vmem_limit_bytes=_vmem_limit_bytes(
                params, depth, rows, dim, inner, mlp_dim, ffn_chunk)),
    )(x3,
      params["ln1w"], params["ln1b"],
      params["wqkv"], params["wout"], params["bout"],
      params["ln2w"], params["ln2b"],
      params["w1"], params["b1"], params["w2"], params["b2"])
    return out.reshape(b, n, dim)


# ----------------------------------------------------------------------------
# Deterministic stacked parameters in the kernel-friendly layout.
#   wqkv: (depth, dim, 3*inner) bf16, Q columns pre-scaled by 1/sqrt(dim_head)
#   wout: (depth, inner, dim) bf16;  w1: (depth, dim, mlp);  w2: (depth, mlp, dim)
#   LN params / biases: f32, shaped (depth, 1, features).
# ----------------------------------------------------------------------------
def init_params(key, depth, dim, heads, dim_head, mlp_dim):
    inner = heads * dim_head
    scale = dim_head ** (-0.5)
    s = 0.02
    ks = jax.random.split(key, 7)
    wqkv = jax.random.normal(ks[0], (depth, dim, 3 * inner), jnp.float32) * s
    wqkv = wqkv.at[:, :, :inner].multiply(scale)   # fold softmax scale into Q
    wout = jax.random.normal(ks[1], (depth, inner, dim), jnp.float32) * s
    bout = jax.random.normal(ks[2], (depth, dim), jnp.float32) * s
    w1 = jax.random.normal(ks[3], (depth, dim, mlp_dim), jnp.float32) * s
    b1 = jax.random.normal(ks[4], (depth, mlp_dim), jnp.float32) * s
    w2 = jax.random.normal(ks[5], (depth, mlp_dim, dim), jnp.float32) * s
    b2 = jax.random.normal(ks[6], (depth, dim), jnp.float32) * s
    return {
        "ln1w": jnp.ones((depth, 1, dim), jnp.float32),
        "ln1b": jnp.zeros((depth, 1, dim), jnp.float32),
        "wqkv": wqkv.astype(jnp.bfloat16),
        "wout": wout.astype(jnp.bfloat16),
        "bout": bout.reshape(depth, 1, dim),
        "ln2w": jnp.ones((depth, 1, dim), jnp.float32),
        "ln2b": jnp.zeros((depth, 1, dim), jnp.float32),
        "w1": w1.astype(jnp.bfloat16),
        "b1": b1.reshape(depth, 1, mlp_dim),
        "w2": w2.astype(jnp.bfloat16),
        "b2": b2.reshape(depth, 1, dim),
    }


# ----------------------------------------------------------------------------
# Pure-JAX reference (same bf16 matmul operand policy as the kernel).
# ----------------------------------------------------------------------------
def ref_layer(x, p, heads, dim_head):
    b, n, dim = x.shape
    inner = heads * dim_head
    bf16 = jnp.bfloat16

    def ln(y, w, g):
        mu = jnp.mean(y, -1, keepdims=True)
        var = jnp.mean((y - mu) ** 2, -1, keepdims=True)
        return (y - mu) / jnp.sqrt(var + 1e-5) * w + g

    xn = ln(x, p["ln1w"][0], p["ln1b"][0])
    qkv = jnp.einsum("bnd,de->bne", xn.astype(bf16), p["wqkv"],
                     preferred_element_type=jnp.float32).astype(bf16)
    q = qkv[..., 0 * inner:1 * inner].reshape(b, n, heads, dim_head)
    k = qkv[..., 1 * inner:2 * inner].reshape(b, n, heads, dim_head)
    v = qkv[..., 2 * inner:3 * inner].reshape(b, n, heads, dim_head)
    q, k, v = (t.transpose(0, 2, 1, 3) for t in (q, k, v))

    dots = jnp.einsum("bhie,bhje->bhij", q, k,
                      preferred_element_type=jnp.float32)
    attn = jax.nn.softmax(dots, axis=-1)
    out = jnp.einsum("bhij,bhje->bhie", attn.astype(bf16), v,
                     preferred_element_type=jnp.float32)
    out = out.transpose(0, 2, 1, 3).reshape(b, n, inner).astype(bf16)
    attn_out = jnp.einsum("bne,ed->bnd", out, p["wout"],
                          preferred_element_type=jnp.float32) + p["bout"][0]
    x = x + attn_out

    xn2 = ln(x, p["ln2w"][0], p["ln2b"][0])
    h1 = jnp.einsum("bnd,dm->bnm", xn2.astype(bf16), p["w1"],
                    preferred_element_type=jnp.float32) + p["b1"][0]
    h1 = 0.5 * h1 * (1.0 + lax.erf(h1 * 0.7071067811865476))
    h2 = jnp.einsum("bnm,md->bnd", h1.astype(bf16), p["w2"],
                    preferred_element_type=jnp.float32) + p["b2"][0]
    return x + h2


def ref_forward(x, params, heads, dim_head):
    depth = params["wqkv"].shape[0]
    for l in range(depth):
        p_l = jax.tree_util.tree_map(lambda a, _l=l: a[_l], params)
        x = ref_layer(x, p_l, heads, dim_head)
    return x


# TODO(synk): the PyTorch masking branch (mask is not None) depends on an
# un-imported `rearrange` and is unreachable; only mask=None is supported.
# TODO(synk): optional fp8 weights for QKV/MLP on v7x (gated, needs scaling
# validation) is not implemented; all matmul operands are bf16.

if __name__ == "__main__":
    # Small config consistent with the module: dim = heads * dim_head.
    B, N = 2, 8
    DIM, HEADS, DIM_HEAD, MLP_DIM, DEPTH = 32, 4, 8, 64, 2

    key = jax.random.PRNGKey(0)
    kx, kp = jax.random.split(key)
    x = jax.random.normal(kx, (B, N, DIM), jnp.float32)
    params = init_params(kp, DEPTH, DIM, HEADS, DIM_HEAD, MLP_DIM)

    fwd = jax.jit(functools.partial(transformer_forward, heads=HEADS,
                                    dim_head=DIM_HEAD, mlp_dim=MLP_DIM))
    out = jax.block_until_ready(fwd(x, params))

    ref = ref_forward(x, params, HEADS, DIM_HEAD)
    np.testing.assert_allclose(np.asarray(out), np.asarray(ref),
                               rtol=1e-2, atol=1e-2)
    print("KERNEL_OK")
</pallas_src>

<mosaic_0001>
module attributes {stable_mosaic.version = 11 : i64} {
  func.func @kernel(%arg0: i32, %arg1: i32, %arg2: memref<1x16x32xf32, #tpu.memory_space<vmem>>, %arg3: memref<1x1x32xf32, #tpu.memory_space<vmem>>, %arg4: memref<1x1x32xf32, #tpu.memory_space<vmem>>, %arg5: memref<1x32x96xbf16, #tpu.memory_space<vmem>>, %arg6: memref<1x32x32xbf16, #tpu.memory_space<vmem>>, %arg7: memref<1x1x32xf32, #tpu.memory_space<vmem>>, %arg8: memref<1x1x32xf32, #tpu.memory_space<vmem>>, %arg9: memref<1x1x32xf32, #tpu.memory_space<vmem>>, %arg10: memref<1x32x64xbf16, #tpu.memory_space<vmem>>, %arg11: memref<1x1x64xf32, #tpu.memory_space<vmem>>, %arg12: memref<1x64x32xbf16, #tpu.memory_space<vmem>>, %arg13: memref<1x1x32xf32, #tpu.memory_space<vmem>>, %arg14: memref<1x16x32xf32, #tpu.memory_space<vmem>>, %arg15: memref<16x32xf32, #tpu.memory_space<vmem>>, %arg16: memref<16x96xbf16, #tpu.memory_space<vmem>>, %arg17: memref<16x32xbf16, #tpu.memory_space<vmem>>) attributes {dimension_semantics = [#tpu.dimension_semantics<parallel>, #tpu.dimension_semantics<arbitrary>], iteration_bounds = array<i64: 1, 2>, scalar_prefetch = 0 : i64, scratch_operands = 3 : i64, tpu.core_type = #tpu.core_type<tc>, window_params = [{transform_indices = @transform_0, window_bounds = array<i64: 1, 16, 32>}, {transform_indices = @transform_1, window_bounds = array<i64: 1, 1, 32>}, {transform_indices = @transform_2, window_bounds = array<i64: 1, 1, 32>}, {transform_indices = @transform_3, window_bounds = array<i64: 1, 32, 96>}, {transform_indices = @transform_4, window_bounds = array<i64: 1, 32, 32>}, {transform_indices = @transform_5, window_bounds = array<i64: 1, 1, 32>}, {transform_indices = @transform_6, window_bounds = array<i64: 1, 1, 32>}, {transform_indices = @transform_7, window_bounds = array<i64: 1, 1, 32>}, {transform_indices = @transform_8, window_bounds = array<i64: 1, 32, 64>}, {transform_indices = @transform_9, window_bounds = array<i64: 1, 1, 64>}, {transform_indices = @transform_10, window_bounds = array<i64: 1, 64, 32>}, {transform_indices = @transform_11, window_bounds = array<i64: 1, 1, 32>}, {transform_indices = @transform_12, window_bounds = array<i64: 1, 16, 32>}]} {
    %c0_i32 = arith.constant 0 : i32
    %0 = arith.cmpi eq, %arg1, %c0_i32 : i32
    %1 = arith.extui %0 : i1 to i32
    %c0_i32_0 = arith.constant 0 : i32
    %2 = arith.cmpi ne, %1, %c0_i32_0 : i32
    scf.if %2 {
      %c0_139 = arith.constant 0 : index
      %c0_140 = arith.constant 0 : index
      %c0_141 = arith.constant 0 : index
      %244 = vector.load %arg2[%c0_139, %c0_140, %c0_141] : memref<1x16x32xf32, #tpu.memory_space<vmem>>, vector<1x16x32xf32>
      %245 = vector.shape_cast %244 : vector<1x16x32xf32> to vector<16x32xf32>
      %c0_142 = arith.constant 0 : index
      %c0_143 = arith.constant 0 : index
      %246 = vector.load %arg15[%c0_142, %c0_143] : memref<16x32xf32, #tpu.memory_space<vmem>>, vector<16x32xf32>
      tpu.vector_store %arg15[%c0_142, %c0_143], %245 {strides = array<i32>} : memref<16x32xf32, #tpu.memory_space<vmem>>, vector<16x32xf32>,
    } else {
    }
    %c0 = arith.constant 0 : index
    %c0_1 = arith.constant 0 : index
    %3 = vector.load %arg15[%c0, %c0_1] : memref<16x32xf32, #tpu.memory_space<vmem>>, vector<16x32xf32>
    %cst = arith.constant dense<0.000000e+00> : vector<16xf32>
    %4 = vector.multi_reduction <add>, %3, %cst [1] : vector<16x32xf32> to vector<16xf32>
    %5 = vector.shape_cast %4 : vector<16xf32> to vector<16x1xf32>
    %cst_2 = arith.constant 3.200000e+01 : f32
    %6 = vector.broadcast %cst_2 : f32 to vector<16x1xf32>
    %7 = arith.divf %5, %6 : vector<16x1xf32>
    %8 = vector.broadcast %7 : vector<16x1xf32> to vector<16x32xf32>
    %9 = arith.subf %3, %8 : vector<16x32xf32>
    %10 = arith.mulf %9, %9 : vector<16x32xf32>
    %cst_3 = arith.constant dense<0.000000e+00> : vector<16xf32>
    %11 = vector.multi_reduction <add>, %10, %cst_3 [1] : vector<16x32xf32> to vector<16xf32>
    %12 = vector.shape_cast %11 : vector<16xf32> to vector<16x1xf32>
    %cst_4 = arith.constant 3.200000e+01 : f32
    %13 = vector.broadcast %cst_4 : f32 to vector<16x1xf32>
    %14 = arith.divf %12, %13 : vector<16x1xf32>
    %15 = vector.broadcast %7 : vector<16x1xf32> to vector<16x32xf32>
    %16 = arith.subf %3, %15 : vector<16x32xf32>
    %cst_5 = arith.constant 9.99999974E-6 : f32
    %17 = vector.broadcast %cst_5 : f32 to vector<16x1xf32>
    %18 = arith.addf %14, %17 : vector<16x1xf32>
    %19 = math.rsqrt %18 : vector<16x1xf32>
    %20 = vector.broadcast %19 : vector<16x1xf32> to vector<16x32xf32>
    %21 = arith.mulf %16, %20 : vector<16x32xf32>
    %c0_6 = arith.constant 0 : index
    %c0_7 = arith.constant 0 : index
    %c0_8 = arith.constant 0 : index
    %22 = vector.load %arg3[%c0_6, %c0_7, %c0_8] : memref<1x1x32xf32, #tpu.memory_space<vmem>>, vector<1x1x32xf32>
    %23 = vector.shape_cast %22 : vector<1x1x32xf32> to vector<1x32xf32>
    %24 = vector.broadcast %23 : vector<1x32xf32> to vector<16x32xf32>
    %25 = arith.mulf %21, %24 : vector<16x32xf32>
    %c0_9 = arith.constant 0 : index
    %c0_10 = arith.constant 0 : index
    %c0_11 = arith.constant 0 : index
    %26 = vector.load %arg4[%c0_9, %c0_10, %c0_11] : memref<1x1x32xf32, #tpu.memory_space<vmem>>, vector<1x1x32xf32>
    %27 = vector.shape_cast %26 : vector<1x1x32xf32> to vector<1x32xf32>
    %28 = vector.broadcast %27 : vector<1x32xf32> to vector<16x32xf32>
    %29 = arith.addf %25, %28 : vector<16x32xf32>
    %30 = arith.truncf %29 : vector<16x32xf32> to vector<16x32xbf16>
    %c0_12 = arith.constant 0 : index
    %c0_13 = arith.constant 0 : index
    %c0_14 = arith.constant 0 : index
    %31 = vector.load %arg5[%c0_12, %c0_13, %c0_14] : memref<1x32x96xbf16, #tpu.memory_space<vmem>>, vector<1x32x96xbf16>
    %32 = vector.shape_cast %31 : vector<1x32x96xbf16> to vector<32x96xbf16>
    %cst_15 = arith.constant dense<0.000000e+00> : vector<16x96xf32>
    %33 = tpu.matmul %30, %32, %cst_15 {dimension_numbers = #tpu.dot_dimension_numbers<[1], [0], [0], [1], [0, 0, 1, 1], [], []>} : vector<16x32xbf16>, vector<32x96xbf16>, vector<16x96xf32> -> vector<16x96xf32>
    %34 = arith.truncf %33 : vector<16x96xf32> to vector<16x96xbf16>
    %c0_16 = arith.constant 0 : index
    %c0_17 = arith.constant 0 : index
    %35 = vector.load %arg16[%c0_16, %c0_17] : memref<16x96xbf16, #tpu.memory_space<vmem>>, vector<16x96xbf16>
    tpu.vector_store %arg16[%c0_16, %c0_17], %34 {strides = array<i32>} : memref<16x96xbf16, #tpu.memory_space<vmem>>, vector<16x96xbf16>,
    %c0_18 = arith.constant 0 : index
    %c0_19 = arith.constant 0 : index
    %36 = vector.load %arg16[%c0_18, %c0_19] : memref<16x96xbf16, #tpu.memory_space<vmem>>, vector<8x8xbf16>
    %c0_20 = arith.constant 0 : index
    %c32 = arith.constant 32 : index
    %37 = vector.load %arg16[%c0_20, %c32] : memref<16x96xbf16, #tpu.memory_space<vmem>>, vector<8x8xbf16>
    %c0_21 = arith.constant 0 : index
    %c64 = arith.constant 64 : index
    %38 = vector.load %arg16[%c0_21, %c64] : memref<16x96xbf16, #tpu.memory_space<vmem>>, vector<8x8xbf16>
    %cst_22 = arith.constant dense<0.000000e+00> : vector<8x8xf32>
    %39 = tpu.matmul %36, %37, %cst_22 {dimension_numbers = #tpu.dot_dimension_numbers<[1], [1], [0], [0], [0, 0, 1, 0], [], []>} : vector<8x8xbf16>, vector<8x8xbf16>, vector<8x8xf32> -> vector<8x8xf32>
    %cst_23 = arith.constant dense<0xFF800000> : vector<8xf32>
    %40 = vector.multi_reduction <maximumf>, %39, %cst_23 [1] : vector<8x8xf32> to vector<8xf32>
    %41 = vector.shape_cast %40 : vector<8xf32> to vector<8x1xf32>
    %42 = vector.broadcast %41 : vector<8x1xf32> to vector<8x8xf32>
    %43 = arith.subf %39, %42 : vector<8x8xf32>
    %44 = math.exp %43 : vector<8x8xf32>
    %cst_24 = arith.constant dense<0.000000e+00> : vector<8xf32>
    %45 = vector.multi_reduction <add>, %44, %cst_24 [1] : vector<8x8xf32> to vector<8xf32>
    %46 = vector.shape_cast %45 : vector<8xf32> to vector<8x1xf32>
    %47 = tpu.reciprocal %46 {approx = true} : vector<8x1xf32> -> vector<8x1xf32>
    %48 = vector.broadcast %47 : vector<8x1xf32> to vector<8x8xf32>
    %49 = arith.mulf %44, %48 : vector<8x8xf32>
    %50 = arith.truncf %49 : vector<8x8xf32> to vector<8x8xbf16>
    %cst_25 = arith.constant dense<0.000000e+00> : vector<8x8xf32>
    %51 = tpu.matmul %50, %38, %cst_25 {dimension_numbers = #tpu.dot_dimension_numbers<[1], [0], [0], [1], [0, 0, 1, 1], [], []>} : vector<8x8xbf16>, vector<8x8xbf16>, vector<8x8xf32> -> vector<8x8xf32>
    %52 = arith.truncf %51 : vector<8x8xf32> to vector<8x8xbf16>
    %c0_26 = arith.constant 0 : index
    %c8 = arith.constant 8 : index
    %53 = vector.load %arg16[%c0_26, %c8] : memref<16x96xbf16, #tpu.memory_space<vmem>>, vector<8x8xbf16>
    %c0_27 = arith.constant 0 : index
    %c40 = arith.constant 40 : index
    %54 = vector.load %arg16[%c0_27, %c40] : memref<16x96xbf16, #tpu.memory_space<vmem>>, vector<8x8xbf16>
    %c0_28 = arith.constant 0 : index
    %c72 = arith.constant 72 : index
    %55 = vector.load %arg16[%c0_28, %c72] : memref<16x96xbf16, #tpu.memory_space<vmem>>, vector<8x8xbf16>
    %cst_29 = arith.constant dense<0.000000e+00> : vector<8x8xf32>
    %56 = tpu.matmul %53, %54, %cst_29 {dimension_numbers = #tpu.dot_dimension_numbers<[1], [1], [0], [0], [0, 0, 1, 0], [], []>} : vector<8x8xbf16>, vector<8x8xbf16>, vector<8x8xf32> -> vector<8x8xf32>
    %cst_30 = arith.constant dense<0xFF800000> : vector<8xf32>
    %57 = vector.multi_reduction <maximumf>, %56, %cst_30 [1] : vector<8x8xf32> to vector<8xf32>
    %58 = vector.shape_cast %57 : vector<8xf32> to vector<8x1xf32>
    %59 = vector.broadcast %58 : vector<8x1xf32> to vector<8x8xf32>
    %60 = arith.subf %56, %59 : vector<8x8xf32>
    %61 = math.exp %60 : vector<8x8xf32>
    %cst_31 = arith.constant dense<0.000000e+00> : vector<8xf32>
    %62 = vector.multi_reduction <add>, %61, %cst_31 [1] : vector<8x8xf32> to vector<8xf32>
    %63 = vector.shape_cast %62 : vector<8xf32> to vector<8x1xf32>
    %64 = tpu.reciprocal %63 {approx = true} : vector<8x1xf32> -> vector<8x1xf32>
    %65 = vector.broadcast %64 : vector<8x1xf32> to vector<8x8xf32>
    %66 = arith.mulf %61, %65 : vector<8x8xf32>
    %67 = arith.truncf %66 : vector<8x8xf32> to vector<8x8xbf16>
    %cst_32 = arith.constant dense<0.000000e+00> : vector<8x8xf32>
    %68 = tpu.matmul %67, %55, %cst_32 {dimension_numbers = #tpu.dot_dimension_numbers<[1], [0], [0], [1], [0, 0, 1, 1], [], []>} : vector<8x8xbf16>, vector<8x8xbf16>, vector<8x8xf32> -> vector<8x8xf32>
    %69 = arith.truncf %68 : vector<8x8xf32> to vector<8x8xbf16>
    %c0_33 = arith.constant 0 : index
    %c16 = arith.constant 16 : index
    %70 = vector.load %arg16[%c0_33, %c16] : memref<16x96xbf16, #tpu.memory_space<vmem>>, vector<8x8xbf16>
    %c0_34 = arith.constant 0 : index
    %c48 = arith.constant 48 : index
    %71 = vector.load %arg16[%c0_34, %c48] : memref<16x96xbf16, #tpu.memory_space<vmem>>, vector<8x8xbf16>
    %c0_35 = arith.constant 0 : index
    %c80 = arith.constant 80 : index
    %72 = vector.load %arg16[%c0_35, %c80] : memref<16x96xbf16, #tpu.memory_space<vmem>>, vector<8x8xbf16>
    %cst_36 = arith.constant dense<0.000000e+00> : vector<8x8xf32>
    %73 = tpu.matmul %70, %71, %cst_36 {dimension_numbers = #tpu.dot_dimension_numbers<[1], [1], [0], [0], [0, 0, 1, 0], [], []>} : vector<8x8xbf16>, vector<8x8xbf16>, vector<8x8xf32> -> vector<8x8xf32>
    %cst_37 = arith.constant dense<0xFF800000> : vector<8xf32>
    %74 = vector.multi_reduction <maximumf>, %73, %cst_37 [1] : vector<8x8xf32> to vector<8xf32>
    %75 = vector.shape_cast %74 : vector<8xf32> to vector<8x1xf32>
    %76 = vector.broadcast %75 : vector<8x1xf32> to vector<8x8xf32>
    %77 = arith.subf %73, %76 : vector<8x8xf32>
    %78 = math.exp %77 : vector<8x8xf32>
    %cst_38 = arith.constant dense<0.000000e+00> : vector<8xf32>
    %79 = vector.multi_reduction <add>, %78, %cst_38 [1] : vector<8x8xf32> to vector<8xf32>
    %80 = vector.shape_cast %79 : vector<8xf32> to vector<8x1xf32>
    %81 = tpu.reciprocal %80 {approx = true} : vector<8x1xf32> -> vector<8x1xf32>
    %82 = vector.broadcast %81 : vector<8x1xf32> to vector<8x8xf32>
    %83 = arith.mulf %78, %82 : vector<8x8xf32>
    %84 = arith.truncf %83 : vector<8x8xf32> to vector<8x8xbf16>
    %cst_39 = arith.constant dense<0.000000e+00> : vector<8x8xf32>
    %85 = tpu.matmul %84, %72, %cst_39 {dimension_numbers = #tpu.dot_dimension_numbers<[1], [0], [0], [1], [0, 0, 1, 1], [], []>} : vector<8x8xbf16>, vector<8x8xbf16>, vector<8x8xf32> -> vector<8x8xf32>
    %86 = arith.truncf %85 : vector<8x8xf32> to vector<8x8xbf16>
    %c0_40 = arith.constant 0 : index
    %c24 = arith.constant 24 : index
    %87 = vector.load %arg16[%c0_40, %c24] : memref<16x96xbf16, #tpu.memory_space<vmem>>, vector<8x8xbf16>
    %c0_41 = arith.constant 0 : index
    %c56 = arith.constant 56 : index
    %88 = vector.load %arg16[%c0_41, %c56] : memref<16x96xbf16, #tpu.memory_space<vmem>>, vector<8x8xbf16>
    %c0_42 = arith.constant 0 : index
    %c88 = arith.constant 88 : index
    %89 = vector.load %arg16[%c0_42, %c88] : memref<16x96xbf16, #tpu.memory_space<vmem>>, vector<8x8xbf16>
    %cst_43 = arith.constant dense<0.000000e+00> : vector<8x8xf32>
    %90 = tpu.matmul %87, %88, %cst_43 {dimension_numbers = #tpu.dot_dimension_numbers<[1], [1], [0], [0], [0, 0, 1, 0], [], []>} : vector<8x8xbf16>, vector<8x8xbf16>, vector<8x8xf32> -> vector<8x8xf32>
    %cst_44 = arith.constant dense<0xFF800000> : vector<8xf32>
    %91 = vector.multi_reduction <maximumf>, %90, %cst_44 [1] : vector<8x8xf32> to vector<8xf32>
    %92 = vector.shape_cast %91 : vector<8xf32> to vector<8x1xf32>
    %93 = vector.broadcast %92 : vector<8x1xf32> to vector<8x8xf32>
    %94 = arith.subf %90, %93 : vector<8x8xf32>
    %95 = math.exp %94 : vector<8x8xf32>
    %cst_45 = arith.constant dense<0.000000e+00> : vector<8xf32>
    %96 = vector.multi_reduction <add>, %95, %cst_45 [1] : vector<8x8xf32> to vector<8xf32>
    %97 = vector.shape_cast %96 : vector<8xf32> to vector<8x1xf32>
    %98 = tpu.reciprocal %97 {approx = true} : vector<8x1xf32> -> vector<8x1xf32>
    %99 = vector.broadcast %98 : vector<8x1xf32> to vector<8x8xf32>
    %100 = arith.mulf %95, %99 : vector<8x8xf32>
    %101 = arith.truncf %100 : vector<8x8xf32> to vector<8x8xbf16>
    %cst_46 = arith.constant dense<0.000000e+00> : vector<8x8xf32>
    %102 = tpu.matmul %101, %89, %cst_46 {dimension_numbers = #tpu.dot_dimension_numbers<[1], [0], [0], [1], [0, 0, 1, 1], [], []>} : vector<8x8xbf16>, vector<8x8xbf16>, vector<8x8xf32> -> vector<8x8xf32>
    %103 = arith.truncf %102 : vector<8x8xf32> to vector<8x8xbf16>
    %104 = tpu.concatenate %52, %69, %86, %103 in 1 : vector<8x8xbf16>, vector<8x8xbf16>, vector<8x8xbf16>, vector<8x8xbf16> -> vector<8x32xbf16>
    %c0_47 = arith.constant 0 : index
    %c0_48 = arith.constant 0 : index
    %105 = vector.load %arg17[%c0_47, %c0_48] : memref<16x32xbf16, #tpu.memory_space<vmem>>, vector<8x32xbf16>
    tpu.vector_store %arg17[%c0_47, %c0_48], %104 {strides = array<i32>} : memref<16x32xbf16, #tpu.memory_space<vmem>>, vector<8x32xbf16>,
    %c8_49 = arith.constant 8 : index
    %c0_50 = arith.constant 0 : index
    %106 = vector.load %arg16[%c8_49, %c0_50] : memref<16x96xbf16, #tpu.memory_space<vmem>>, vector<8x8xbf16>
    %c8_51 = arith.constant 8 : index
    %c32_52 = arith.constant 32 : index
    %107 = vector.load %arg16[%c8_51, %c32_52] : memref<16x96xbf16, #tpu.memory_space<vmem>>, vector<8x8xbf16>
    %c8_53 = arith.constant 8 : index
    %c64_54 = arith.constant 64 : index
    %108 = vector.load %arg16[%c8_53, %c64_54] : memref<16x96xbf16, #tpu.memory_space<vmem>>, vector<8x8xbf16>
    %cst_55 = arith.constant dense<0.000000e+00> : vector<8x8xf32>
    %109 = tpu.matmul %106, %107, %cst_55 {dimension_numbers = #tpu.dot_dimension_numbers<[1], [1], [0], [0], [0, 0, 1, 0], [], []>} : vector<8x8xbf16>, vector<8x8xbf16>, vector<8x8xf32> -> vector<8x8xf32>
    %cst_56 = arith.constant dense<0xFF800000> : vector<8xf32>
    %110 = vector.multi_reduction <maximumf>, %109, %cst_56 [1] : vector<8x8xf32> to vector<8xf32>
    %111 = vector.shape_cast %110 : vector<8xf32> to vector<8x1xf32>
    %112 = vector.broadcast %111 : vector<8x1xf32> to vector<8x8xf32>
    %113 = arith.subf %109, %112 : vector<8x8xf32>
    %114 = math.exp %113 : vector<8x8xf32>
    %cst_57 = arith.constant dense<0.000000e+00> : vector<8xf32>
    %115 = vector.multi_reduction <add>, %114, %cst_57 [1] : vector<8x8xf32> to vector<8xf32>
    %116 = vector.shape_cast %115 : vector<8xf32> to vector<8x1xf32>
    %117 = tpu.reciprocal %116 {approx = true} : vector<8x1xf32> -> vector<8x1xf32>
    %118 = vector.broadcast %117 : vector<8x1xf32> to vector<8x8xf32>
    %119 = arith.mulf %114, %118 : vector<8x8xf32>
    %120 = arith.truncf %119 : vector<8x8xf32> to vector<8x8xbf16>
    %cst_58 = arith.constant dense<0.000000e+00> : vector<8x8xf32>
    %121 = tpu.matmul %120, %108, %cst_58 {dimension_numbers = #tpu.dot_dimension_numbers<[1], [0], [0], [1], [0, 0, 1, 1], [], []>} : vector<8x8xbf16>, vector<8x8xbf16>, vector<8x8xf32> -> vector<8x8xf32>
    %122 = arith.truncf %121 : vector<8x8xf32> to vector<8x8xbf16>
    %c8_59 = arith.constant 8 : index
    %c8_60 = arith.constant 8 : index
    %123 = vector.load %arg16[%c8_59, %c8_60] : memref<16x96xbf16, #tpu.memory_space<vmem>>, vector<8x8xbf16>
    %c8_61 = arith.constant 8 : index
    %c40_62 = arith.constant 40 : index
    %124 = vector.load %arg16[%c8_61, %c40_62] : memref<16x96xbf16, #tpu.memory_space<vmem>>, vector<8x8xbf16>
    %c8_63 = arith.constant 8 : index
    %c72_64 = arith.constant 72 : index
    %125 = vector.load %arg16[%c8_63, %c72_64] : memref<16x96xbf16, #tpu.memory_space<vmem>>, vector<8x8xbf16>
    %cst_65 = arith.constant dense<0.000000e+00> : vector<8x8xf32>
    %126 = tpu.matmul %123, %124, %cst_65 {dimension_numbers = #tpu.dot_dimension_numbers<[1], [1], [0], [0], [0, 0, 1, 0], [], []>} : vector<8x8xbf16>, vector<8x8xbf16>, vector<8x8xf32> -> vector<8x8xf32>
    %cst_66 = arith.constant dense<0xFF800000> : vector<8xf32>
    %127 = vector.multi_reduction <maximumf>, %126, %cst_66 [1] : vector<8x8xf32> to vector<8xf32>
    %128 = vector.shape_cast %127 : vector<8xf32> to vector<8x1xf32>
    %129 = vector.broadcast %128 : vector<8x1xf32> to vector<8x8xf32>
    %130 = arith.subf %126, %129 : vector<8x8xf32>
    %131 = math.exp %130 : vector<8x8xf32>
    %cst_67 = arith.constant dense<0.000000e+00> : vector<8xf32>
    %132 = vector.multi_reduction <add>, %131, %cst_67 [1] : vector<8x8xf32> to vector<8xf32>
    %133 = vector.shape_cast %132 : vector<8xf32> to vector<8x1xf32>
    %134 = tpu.reciprocal %133 {approx = true} : vector<8x1xf32> -> vector<8x1xf32>
    %135 = vector.broadcast %134 : vector<8x1xf32> to vector<8x8xf32>
    %136 = arith.mulf %131, %135 : vector<8x8xf32>
    %137 = arith.truncf %136 : vector<8x8xf32> to vector<8x8xbf16>
    %cst_68 = arith.constant dense<0.000000e+00> : vector<8x8xf32>
    %138 = tpu.matmul %137, %125, %cst_68 {dimension_numbers = #tpu.dot_dimension_numbers<[1], [0], [0], [1], [0, 0, 1, 1], [], []>} : vector<8x8xbf16>, vector<8x8xbf16>, vector<8x8xf32> -> vector<8x8xf32>
    %139 = arith.truncf %138 : vector<8x8xf32> to vector<8x8xbf16>
    %c8_69 = arith.constant 8 : index
    %c16_70 = arith.constant 16 : index
    %140 = vector.load %arg16[%c8_69, %c16_70] : memref<16x96xbf16, #tpu.memory_space<vmem>>, vector<8x8xbf16>
    %c8_71 = arith.constant 8 : index
    %c48_72 = arith.constant 48 : index
    %141 = vector.load %arg16[%c8_71, %c48_72] : memref<16x96xbf16, #tpu.memory_space<vmem>>, vector<8x8xbf16>
    %c8_73 = arith.constant 8 : index
    %c80_74 = arith.constant 80 : index
    %142 = vector.load %arg16[%c8_73, %c80_74] : memref<16x96xbf16, #tpu.memory_space<vmem>>, vector<8x8xbf16>
    %cst_75 = arith.constant dense<0.000000e+00> : vector<8x8xf32>
    %143 = tpu.matmul %140, %141, %cst_75 {dimension_numbers = #tpu.dot_dimension_numbers<[1], [1], [0], [0], [0, 0, 1, 0], [], []>} : vector<8x8xbf16>, vector<8x8xbf16>, vector<8x8xf32> -> vector<8x8xf32>
    %cst_76 = arith.constant dense<0xFF800000> : vector<8xf32>
    %144 = vector.multi_reduction <maximumf>, %143, %cst_76 [1] : vector<8x8xf32> to vector<8xf32>
    %145 = vector.shape_cast %144 : vector<8xf32> to vector<8x1xf32>
    %146 = vector.broadcast %145 : vector<8x1xf32> to vector<8x8xf32>
    %147 = arith.subf %143, %146 : vector<8x8xf32>
    %148 = math.exp %147 : vector<8x8xf32>
    %cst_77 = arith.constant dense<0.000000e+00> : vector<8xf32>
    %149 = vector.multi_reduction <add>, %148, %cst_77 [1] : vector<8x8xf32> to vector<8xf32>
    %150 = vector.shape_cast %149 : vector<8xf32> to vector<8x1xf32>
    %151 = tpu.reciprocal %150 {approx = true} : vector<8x1xf32> -> vector<8x1xf32>
    %152 = vector.broadcast %151 : vector<8x1xf32> to vector<8x8xf32>
    %153 = arith.mulf %148, %152 : vector<8x8xf32>
    %154 = arith.truncf %153 : vector<8x8xf32> to vector<8x8xbf16>
    %cst_78 = arith.constant dense<0.000000e+00> : vector<8x8xf32>
    %155 = tpu.matmul %154, %142, %cst_78 {dimension_numbers = #tpu.dot_dimension_numbers<[1], [0], [0], [1], [0, 0, 1, 1], [], []>} : vector<8x8xbf16>, vector<8x8xbf16>, vector<8x8xf32> -> vector<8x8xf32>
    %156 = arith.truncf %155 : vector<8x8xf32> to vector<8x8xbf16>
    %c8_79 = arith.constant 8 : index
    %c24_80 = arith.constant 24 : index
    %157 = vector.load %arg16[%c8_79, %c24_80] : memref<16x96xbf16, #tpu.memory_space<vmem>>, vector<8x8xbf16>
    %c8_81 = arith.constant 8 : index
    %c56_82 = arith.constant 56 : index
    %158 = vector.load %arg16[%c8_81, %c56_82] : memref<16x96xbf16, #tpu.memory_space<vmem>>, vector<8x8xbf16>
    %c8_83 = arith.constant 8 : index
    %c88_84 = arith.constant 88 : index
    %159 = vector.load %arg16[%c8_83, %c88_84] : memref<16x96xbf16, #tpu.memory_space<vmem>>, vector<8x8xbf16>
    %cst_85 = arith.constant dense<0.000000e+00> : vector<8x8xf32>
    %160 = tpu.matmul %157, %158, %cst_85 {dimension_numbers = #tpu.dot_dimension_numbers<[1], [1], [0], [0], [0, 0, 1, 0], [], []>} : vector<8x8xbf16>, vector<8x8xbf16>, vector<8x8xf32> -> vector<8x8xf32>
    %cst_86 = arith.constant dense<0xFF800000> : vector<8xf32>
    %161 = vector.multi_reduction <maximumf>, %160, %cst_86 [1] : vector<8x8xf32> to vector<8xf32>
    %162 = vector.shape_cast %161 : vector<8xf32> to vector<8x1xf32>
    %163 = vector.broadcast %162 : vector<8x1xf32> to vector<8x8xf32>
    %164 = arith.subf %160, %163 : vector<8x8xf32>
    %165 = math.exp %164 : vector<8x8xf32>
    %cst_87 = arith.constant dense<0.000000e+00> : vector<8xf32>
    %166 = vector.multi_reduction <add>, %165, %cst_87 [1] : vector<8x8xf32> to vector<8xf32>
    %167 = vector.shape_cast %166 : vector<8xf32> to vector<8x1xf32>
    %168 = tpu.reciprocal %167 {approx = true} : vector<8x1xf32> -> vector<8x1xf32>
    %169 = vector.broadcast %168 : vector<8x1xf32> to vector<8x8xf32>
    %170 = arith.mulf %165, %169 : vector<8x8xf32>
    %171 = arith.truncf %170 : vector<8x8xf32> to vector<8x8xbf16>
    %cst_88 = arith.constant dense<0.000000e+00> : vector<8x8xf32>
    %172 = tpu.matmul %171, %159, %cst_88 {dimension_numbers = #tpu.dot_dimension_numbers<[1], [0], [0], [1], [0, 0, 1, 1], [], []>} : vector<8x8xbf16>, vector<8x8xbf16>, vector<8x8xf32> -> vector<8x8xf32>
    %173 = arith.truncf %172 : vector<8x8xf32> to vector<8x8xbf16>
    %174 = tpu.concatenate %122, %139, %156, %173 in 1 : vector<8x8xbf16>, vector<8x8xbf16>, vector<8x8xbf16>, vector<8x8xbf16> -> vector<8x32xbf16>
    %c8_89 = arith.constant 8 : index
    %c0_90 = arith.constant 0 : index
    %175 = vector.load %arg17[%c8_89, %c0_90] : memref<16x32xbf16, #tpu.memory_space<vmem>>, vector<8x32xbf16>
    tpu.vector_store %arg17[%c8_89, %c0_90], %174 {strides = array<i32>} : memref<16x32xbf16, #tpu.memory_space<vmem>>, vector<8x32xbf16>,
    %c0_91 = arith.constant 0 : index
    %c0_92 = arith.constant 0 : index
    %176 = vector.load %arg17[%c0_91, %c0_92] : memref<16x32xbf16, #tpu.memory_space<vmem>>, vector<16x32xbf16>
    %c0_93 = arith.constant 0 : index
    %c0_94 = arith.constant 0 : index
    %c0_95 = arith.constant 0 : index
    %177 = vector.load %arg6[%c0_93, %c0_94, %c0_95] : memref<1x32x32xbf16, #tpu.memory_space<vmem>>, vector<1x32x32xbf16>
    %178 = vector.shape_cast %177 : vector<1x32x32xbf16> to vector<32x32xbf16>
    %cst_96 = arith.constant dense<0.000000e+00> : vector<16x32xf32>
    %179 = tpu.matmul %176, %178, %cst_96 {dimension_numbers = #tpu.dot_dimension_numbers<[1], [0], [0], [1], [0, 0, 1, 1], [], []>} : vector<16x32xbf16>, vector<32x32xbf16>, vector<16x32xf32> -> vector<16x32xf32>
    %c0_97 = arith.constant 0 : index
    %c0_98 = arith.constant 0 : index
    %c0_99 = arith.constant 0 : index
    %180 = vector.load %arg7[%c0_97, %c0_98, %c0_99] : memref<1x1x32xf32, #tpu.memory_space<vmem>>, vector<1x1x32xf32>
    %181 = vector.shape_cast %180 : vector<1x1x32xf32> to vector<1x32xf32>
    %182 = vector.broadcast %181 : vector<1x32xf32> to vector<16x32xf32>
    %183 = arith.addf %179, %182 : vector<16x32xf32>
    %184 = arith.addf %3, %183 : vector<16x32xf32>
    %cst_100 = arith.constant dense<0.000000e+00> : vector<16xf32>
    %185 = vector.multi_reduction <add>, %184, %cst_100 [1] : vector<16x32xf32> to vector<16xf32>
    %186 = vector.shape_cast %185 : vector<16xf32> to vector<16x1xf32>
    %cst_101 = arith.constant 3.200000e+01 : f32
    %187 = vector.broadcast %cst_101 : f32 to vector<16x1xf32>
    %188 = arith.divf %186, %187 : vector<16x1xf32>
    %189 = vector.broadcast %188 : vector<16x1xf32> to vector<16x32xf32>
    %190 = arith.subf %184, %189 : vector<16x32xf32>
    %191 = arith.mulf %190, %190 : vector<16x32xf32>
    %cst_102 = arith.constant dense<0.000000e+00> : vector<16xf32>
    %192 = vector.multi_reduction <add>, %191, %cst_102 [1] : vector<16x32xf32> to vector<16xf32>
    %193 = vector.shape_cast %192 : vector<16xf32> to vector<16x1xf32>
    %cst_103 = arith.constant 3.200000e+01 : f32
    %194 = vector.broadcast %cst_103 : f32 to vector<16x1xf32>
    %195 = arith.divf %193, %194 : vector<16x1xf32>
    %196 = vector.broadcast %188 : vector<16x1xf32> to vector<16x32xf32>
    %197 = arith.subf %184, %196 : vector<16x32xf32>
    %cst_104 = arith.constant 9.99999974E-6 : f32
    %198 = vector.broadcast %cst_104 : f32 to vector<16x1xf32>
    %199 = arith.addf %195, %198 : vector<16x1xf32>
    %200 = math.rsqrt %199 : vector<16x1xf32>
    %201 = vector.broadcast %200 : vector<16x1xf32> to vector<16x32xf32>
    %202 = arith.mulf %197, %201 : vector<16x32xf32>
    %c0_105 = arith.constant 0 : index
    %c0_106 = arith.constant 0 : index
    %c0_107 = arith.constant 0 : index
    %203 = vector.load %arg8[%c0_105, %c0_106, %c0_107] : memref<1x1x32xf32, #tpu.memory_space<vmem>>, vector<1x1x32xf32>
    %204 = vector.shape_cast %203 : vector<1x1x32xf32> to vector<1x32xf32>
    %205 = vector.broadcast %204 : vector<1x32xf32> to vector<16x32xf32>
    %206 = arith.mulf %202, %205 : vector<16x32xf32>
    %c0_108 = arith.constant 0 : index
    %c0_109 = arith.constant 0 : index
    %c0_110 = arith.constant 0 : index
    %207 = vector.load %arg9[%c0_108, %c0_109, %c0_110] : memref<1x1x32xf32, #tpu.memory_space<vmem>>, vector<1x1x32xf32>
    %208 = vector.shape_cast %207 : vector<1x1x32xf32> to vector<1x32xf32>
    %209 = vector.broadcast %208 : vector<1x32xf32> to vector<16x32xf32>
    %210 = arith.addf %206, %209 : vector<16x32xf32>
    %211 = arith.truncf %210 : vector<16x32xf32> to vector<16x32xbf16>
    %c0_111 = arith.constant 0 : index
    %c0_112 = arith.constant 0 : index
    %c0_113 = arith.constant 0 : index
    %212 = vector.load %arg13[%c0_111, %c0_112, %c0_113] : memref<1x1x32xf32, #tpu.memory_space<vmem>>, vector<1x1x32xf32>
    %213 = vector.shape_cast %212 : vector<1x1x32xf32> to vector<1x32xf32>
    %214 = vector.broadcast %213 : vector<1x32xf32> to vector<16x32xf32>
    %215 = arith.addf %184, %214 : vector<16x32xf32>
    %c0_114 = arith.constant 0 : index
    %c0_115 = arith.constant 0 : index
    %216 = vector.load %arg15[%c0_114, %c0_115] : memref<16x32xf32, #tpu.memory_space<vmem>>, vector<16x32xf32>
    tpu.vector_store %arg15[%c0_114, %c0_115], %215 {strides = array<i32>} : memref<16x32xf32, #tpu.memory_space<vmem>>, vector<16x32xf32>,
    %c0_116 = arith.constant 0 : index
    %c0_117 = arith.constant 0 : index
    %c0_118 = arith.constant 0 : index
    %217 = vector.load %arg11[%c0_116, %c0_117, %c0_118] : memref<1x1x64xf32, #tpu.memory_space<vmem>>, vector<1x1x64xf32>
    %218 = vector.shape_cast %217 : vector<1x1x64xf32> to vector<1x64xf32>
    %c0_i32_119 = arith.constant 0 : i32
    %c0_i32_120 = arith.constant 0 : i32
    %c0_i32_121 = arith.constant 0 : i32
    %219 = tpu.memref_slice %arg10[%c0_i32_119, %c0_i32_120, %c0_i32_121] : memref<1x32x64xbf16, #tpu.memory_space<vmem>> -> memref<1x32x64xbf16, #tpu.memory_space<vmem>>
    %220 = tpu.memref_squeeze %219 : memref<1x32x64xbf16, #tpu.memory_space<vmem>> -> memref<32x64xbf16, #tpu.memory_space<vmem>>
    %c0_122 = arith.constant 0 : index
    %c0_123 = arith.constant 0 : index
    %221 = vector.load %220[%c0_122, %c0_123] : memref<32x64xbf16, #tpu.memory_space<vmem>>, vector<32x64xbf16>
    %cst_124 = arith.constant dense<0.000000e+00> : vector<16x64xf32>
    %222 = tpu.matmul %211, %221, %cst_124 {dimension_numbers = #tpu.dot_dimension_numbers<[1], [0], [0], [1], [0, 0, 1, 1], [], []>} : vector<16x32xbf16>, vector<32x64xbf16>, vector<16x64xf32> -> vector<16x64xf32>
    %223 = vector.broadcast %218 : vector<1x64xf32> to vector<16x64xf32>
    %224 = arith.addf %222, %223 : vector<16x64xf32>
    %cst_125 = arith.constant 5.000000e-01 : f32
    %225 = vector.broadcast %cst_125 : f32 to vector<16x64xf32>
    %226 = arith.mulf %225, %224 : vector<16x64xf32>
    %cst_126 = arith.constant 0.707106769 : f32
    %227 = vector.broadcast %cst_126 : f32 to vector<16x64xf32>
    %228 = arith.mulf %224, %227 : vector<16x64xf32>
    %229 = math.erf %228 : vector<16x64xf32>
    %cst_127 = arith.constant 1.000000e+00 : f32
    %230 = vector.broadcast %cst_127 : f32 to vector<16x64xf32>
    %231 = arith.addf %230, %229 : vector<16x64xf32>
    %232 = arith.mulf %226, %231 : vector<16x64xf32>
    %c0_128 = arith.constant 0 : index
    %c0_129 = arith.constant 0 : index
    %233 = vector.load %arg15[%c0_128, %c0_129] : memref<16x32xf32, #tpu.memory_space<vmem>>, vector<16x32xf32>
    %234 = arith.truncf %232 : vector<16x64xf32> to vector<16x64xbf16>
    %c0_i32_130 = arith.constant 0 : i32
    %c0_i32_131 = arith.constant 0 : i32
    %c0_i32_132 = arith.constant 0 : i32
    %235 = tpu.memref_slice %arg12[%c0_i32_130, %c0_i32_131, %c0_i32_132] : memref<1x64x32xbf16, #tpu.memory_space<vmem>> -> memref<1x64x32xbf16, #tpu.memory_space<vmem>>
    %236 = tpu.memref_squeeze %235 : memref<1x64x32xbf16, #tpu.memory_space<vmem>> -> memref<64x32xbf16, #tpu.memory_space<vmem>>
    %c0_133 = arith.constant 0 : index
    %c0_134 = arith.constant 0 : index
    %237 = vector.load %236[%c0_133, %c0_134] : memref<64x32xbf16, #tpu.memory_space<vmem>>, vector<64x32xbf16>
    %cst_135 = arith.constant dense<0.000000e+00> : vector<16x32xf32>
    %238 = tpu.matmul %234, %237, %cst_135 {dimension_numbers = #tpu.dot_dimension_numbers<[1], [0], [0], [1], [0, 0, 1, 1], [], []>} : vector<16x64xbf16>, vector<64x32xbf16>, vector<16x32xf32> -> vector<16x32xf32>
    %239 = arith.addf %233, %238 : vector<16x32xf32>
    %c0_136 = arith.constant 0 : index
    %c0_137 = arith.constant 0 : index
    %240 = vector.load %arg15[%c0_136, %c0_137] : memref<16x32xf32, #tpu.memory_space<vmem>>, vector<16x32xf32>
    tpu.vector_store %arg15[%c0_136, %c0_137], %239 {strides = array<i32>} : memref<16x32xf32, #tpu.memory_space<vmem>>, vector<16x32xf32>,
    %c1_i32 = arith.constant 1 : i32
    %241 = arith.cmpi eq, %arg1, %c1_i32 : i32
    %242 = arith.extui %241 : i1 to i32
    %c0_i32_138 = arith.constant 0 : i32
    %243 = arith.cmpi ne, %242, %c0_i32_138 : i32
    scf.if %243 {
      %c0_139 = arith.constant 0 : index
      %c0_140 = arith.constant 0 : index
      %244 = vector.load %arg15[%c0_139, %c0_140] : memref<16x32xf32, #tpu.memory_space<vmem>>, vector<16x32xf32>
      %c0_141 = arith.constant 0 : index
      %c0_142 = arith.constant 0 : index
      %c0_143 = arith.constant 0 : index
      %245 = vector.load %arg14[%c0_141, %c0_142, %c0_143] : memref<1x16x32xf32, #tpu.memory_space<vmem>>, vector<1x16x32xf32>
      %246 = vector.shape_cast %245 : vector<1x16x32xf32> to vector<16x32xf32>
      %247 = vector.shape_cast %244 : vector<16x32xf32> to vector<1x16x32xf32>
      tpu.vector_store %arg14[%c0_141, %c0_142, %c0_143], %247 {strides = array<i32>} : memref<1x16x32xf32, #tpu.memory_space<vmem>>, vector<1x16x32xf32>,
    } else {
    }
    return
  }
  func.func @transform_0(%arg0: i32, %arg1: i32) -> (i32, i32, i32) {
    %c0_i32 = arith.constant 0 : i32
    %c0_i32_0 = arith.constant 0 : i32
    %c0_i32_1 = arith.constant 0 : i32
    return %arg0, %c0_i32, %c0_i32_0 : i32, i32, i32
  }
  func.func @transform_1(%arg0: i32, %arg1: i32) -> (i32, i32, i32) {
    %c0_i32 = arith.constant 0 : i32
    %c0_i32_0 = arith.constant 0 : i32
    %c0_i32_1 = arith.constant 0 : i32
    return %arg1, %c0_i32, %c0_i32_0 : i32, i32, i32
  }
  func.func @transform_2(%arg0: i32, %arg1: i32) -> (i32, i32, i32) {
    %c0_i32 = arith.constant 0 : i32
    %c0_i32_0 = arith.constant 0 : i32
    %c0_i32_1 = arith.constant 0 : i32
    return %arg1, %c0_i32, %c0_i32_0 : i32, i32, i32
  }
  func.func @transform_3(%arg0: i32, %arg1: i32) -> (i32, i32, i32) {
    %c0_i32 = arith.constant 0 : i32
    %c0_i32_0 = arith.constant 0 : i32
    %c0_i32_1 = arith.constant 0 : i32
    return %arg1, %c0_i32, %c0_i32_0 : i32, i32, i32
  }
  func.func @transform_4(%arg0: i32, %arg1: i32) -> (i32, i32, i32) {
    %c0_i32 = arith.constant 0 : i32
    %c0_i32_0 = arith.constant 0 : i32
    %c0_i32_1 = arith.constant 0 : i32
    return %arg1, %c0_i32, %c0_i32_0 : i32, i32, i32
  }
  func.func @transform_5(%arg0: i32, %arg1: i32) -> (i32, i32, i32) {
    %c0_i32 = arith.constant 0 : i32
    %c0_i32_0 = arith.constant 0 : i32
    %c0_i32_1 = arith.constant 0 : i32
    return %arg1, %c0_i32, %c0_i32_0 : i32, i32, i32
  }
  func.func @transform_6(%arg0: i32, %arg1: i32) -> (i32, i32, i32) {
    %c0_i32 = arith.constant 0 : i32
    %c0_i32_0 = arith.constant 0 : i32
    %c0_i32_1 = arith.constant 0 : i32
    return %arg1, %c0_i32, %c0_i32_0 : i32, i32, i32
  }
  func.func @transform_7(%arg0: i32, %arg1: i32) -> (i32, i32, i32) {
    %c0_i32 = arith.constant 0 : i32
    %c0_i32_0 = arith.constant 0 : i32
    %c0_i32_1 = arith.constant 0 : i32
    return %arg1, %c0_i32, %c0_i32_0 : i32, i32, i32
  }
  func.func @transform_8(%arg0: i32, %arg1: i32) -> (i32, i32, i32) {
    %c0_i32 = arith.constant 0 : i32
    %c0_i32_0 = arith.constant 0 : i32
    %c0_i32_1 = arith.constant 0 : i32
    return %arg1, %c0_i32, %c0_i32_0 : i32, i32, i32
  }
  func.func @transform_9(%arg0: i32, %arg1: i32) -> (i32, i32, i32) {
    %c0_i32 = arith.constant 0 : i32
    %c0_i32_0 = arith.constant 0 : i32
    %c0_i32_1 = arith.constant 0 : i32
    return %arg1, %c0_i32, %c0_i32_0 : i32, i32, i32
  }
  func.func @transform_10(%arg0: i32, %arg1: i32) -> (i32, i32, i32) {
    %c0_i32 = arith.constant 0 : i32
    %c0_i32_0 = arith.constant 0 : i32
    %c0_i32_1 = arith.constant 0 : i32
    return %arg1, %c0_i32, %c0_i32_0 : i32, i32, i32
  }
  func.func @transform_11(%arg0: i32, %arg1: i32) -> (i32, i32, i32) {
    %c0_i32 = arith.constant 0 : i32
    %c0_i32_0 = arith.constant 0 : i32
    %c0_i32_1 = arith.constant 0 : i32
    return %arg1, %c0_i32, %c0_i32_0 : i32, i32, i32
  }
  func.func @transform_12(%arg0: i32, %arg1: i32) -> (i32, i32, i32) {
    %c0_i32 = arith.constant 0 : i32
    %c0_i32_0 = arith.constant 0 : i32
    %c0_i32_1 = arith.constant 0 : i32
    return %arg0, %c0_i32, %c0_i32_0 : i32, i32, i32
  }
}

</mosaic_0001>

<llo_original>
// kernel: transformer_forward.1
$region0: #{transformer_forward.1}
  #allocation0 [shape = 'u32[]', space=smem, size = 0x4, offset = 0x4, fixed_abs, tag = 'smem constant byte address 0x4 - core index']
  #allocation1 [shape = 'u32[144,128]{1,0:T(1,128)}', space=vmem, size = 0x12000, scoped, tag = 'internal scratch']
  #allocation2 [shape = 'f32[16,32]{1,0:T(8,128)}', space=vmem, size = 0x2000, scoped, tag = 'scratch operand']
  #allocation3 [shape = 'bf16[16,96]{1,0:T(16,128)(2,1)}', space=vmem, size = 0x1000, scoped, tag = 'scratch operand']
  #allocation4 [shape = 'bf16[16,32]{1,0:T(16,128)(2,1)}', space=vmem, size = 0x1000, scoped, tag = 'scratch operand']
  %s0 = inlined_call_operand.hbm [shape: f32[1,16,32], index: 0, kind: input, shape index: {}]
  %s1 = inlined_call_operand.vmem [shape: f32[2,1,32], index: 1, kind: input, shape index: {}]
  %s2 = inlined_call_operand.vmem [shape: f32[2,1,32], index: 2, kind: input, shape index: {}]
  %s3 = inlined_call_operand.vmem [shape: bf16[2,32,96], index: 3, kind: input, shape index: {}]
  %s4 = inlined_call_operand.vmem [shape: bf16[2,32,32], index: 4, kind: input, shape index: {}]
  %s5 = inlined_call_operand.hbm [shape: f32[2,1,32], index: 5, kind: input, shape index: {}]
  %s6 = inlined_call_operand.hbm [shape: f32[2,1,32], index: 6, kind: input, shape index: {}]
  %s7 = inlined_call_operand.hbm [shape: f32[2,1,32], index: 7, kind: input, shape index: {}]
  %s8 = inlined_call_operand.vmem [shape: bf16[2,32,64], index: 8, kind: input, shape index: {}]
  %s9 = inlined_call_operand.hbm [shape: f32[2,1,64], index: 9, kind: input, shape index: {}]
  %s10 = inlined_call_operand.vmem [shape: bf16[2,64,32], index: 10, kind: input, shape index: {}]
  %s11 = inlined_call_operand.hbm [shape: f32[2,1,32], index: 11, kind: input, shape index: {}]
  %s12 = inlined_call_operand.hbm [shape: f32[1,16,32], index: 12, kind: output, shape index: {}]
  %s13 = sld [smem:[#allocation0]]
  $region113: #{transformer_forward.1} parent=0
    _
  %s15 = ssub.s32 1, %s13
  %s16 = scalar_select 0, %s15, %s13
  $region1: #{transformer_forward.1} parent=0
    #allocation5 [shape = 'u8[8192]{0}', space=vmem, size = 0x2000, scoped, tag = 'input window, operand 0, single buffered']
    #allocation6 [shape = 's32[2]{0}', space=sflag, size = 0x8, scoped, tag = 'scoped memory for transformer_forward.1']
    #allocation7 [shape = 's32[2]{0}', space=sflag, size = 0x8, scoped, tag = 'scoped memory for transformer_forward.1']
    #allocation8 [shape = 'u8[1024]{0}', space=vmem, size = 0x400, scoped, tag = 'input window, operand 5']
    #allocation9 [shape = 's32[2]{0}', space=sflag, size = 0x8, scoped, tag = 'scoped memory for transformer_forward.1']
    #allocation10 [shape = 'u8[1024]{0}', space=vmem, size = 0x400, scoped, tag = 'input window, operand 6']
    #allocation11 [shape = 'u8[1024]{0}', space=vmem, size = 0x400, scoped, tag = 'input window, operand 7']
    #allocation12 [shape = 's32[2]{0}', space=sflag, size = 0x8, scoped, tag = 'scoped memory for transformer_forward.1']
    #allocation13 [shape = 'u8[1024]{0}', space=vmem, size = 0x400, scoped, tag = 'input window, operand 9']
    #allocation14 [shape = 'u8[1024]{0}', space=vmem, size = 0x400, scoped, tag = 'input window, operand 11']
    #allocation15 [shape = 's32[2]{0}', space=sflag, size = 0x8, scoped, tag = 'scoped memory for transformer_forward.1']
    #allocation16 [shape = 'u8[8192]{0}', space=vmem, size = 0x2000, scoped, tag = 'output window, operand 0, single buffered']
    %17 = vsyncpa [#allocation6], 0
    %18 = vsyncpa [#allocation9], 0
    %s19 = scalar_lea.sflag [#allocation9], 1
    %20 = vsyncpa %s19, 0
    %21 = vsyncpa [#allocation12], 0
    %s22 = scalar_lea.sflag [#allocation12], 1
    %23 = vsyncpa %s22, 0
    %24 = vsyncpa [#allocation15], 0
    %s25 = scalar_lea.sflag [#allocation15], 1
    %26 = vsyncpa %s25, 0
    %27 = vsyncpa [#allocation7], 0
    loop: start=0, step=1, limit=4
    $region2: #{transformer_forward.1} parent=1 // loop_pre_header
      _
    $region3: #{transformer_forward.1} parent=1 // loop_header
      %s29 = sphi 0, %s33
      %p30 = scmp.ge.s32.totalorder %s29, 4
      %s36 = sphi 0, %s48
      %s37 = sphi 0, %s44
      %s38 = sphi 0, %s36
      %s39 = sphi 0, %s37
      %s40 = sphi 0, %s38
      %s41 = sphi 0, %s39
      %s51 = sphi 0, %s53
      %s54 = sphi 0, %s51
      %s55 = sphi 0, %s54
      %s71 = sphi 0, %s55
      %s77 = sphi 0, %s79
      %s80 = sphi 0, %s77
      %s81 = sphi 0, %s80
      %s97 = sphi 0, %s81
      %s103 = sphi 0, %s105
      %s106 = sphi 0, %s103
      %s107 = sphi 0, %s106
      %s123 = sphi 0, %s107
      %s129 = sphi 0, %s131
      %s132 = sphi 0, %s129
      %s133 = sphi 0, %s132
      %s149 = sphi 0, %s133
      %s155 = sphi 0, %s157
      %s158 = sphi 0, %s155
      %s159 = sphi 0, %s158
      %s175 = sphi 0, %s159
      %s181 = sphi 0, %s183
      %s184 = sphi 0, %s181
      %s185 = sphi 0, %s184
      %s201 = sphi 0, %s185
      %s207 = sphi 0, %s209
      %s210 = sphi 0, %s207
      %s211 = sphi 0, %s210
      %s227 = sphi 0, %s211
      %s233 = sphi 0, %s235
      %s236 = sphi 0, %s233
      %s237 = sphi 0, %s236
      %s253 = sphi 0, %s237
      %s259 = sphi 0, %s261
      %s262 = sphi 0, %s259
      %s263 = sphi 0, %s262
      %s279 = sphi 0, %s263
      %s285 = sphi 0, %s287
      %s288 = sphi 0, %s285
      %s289 = sphi 0, %s288
      %s305 = sphi 0, %s289
      %s311 = sphi 0, %s313
      %s314 = sphi 0, %s311
      %s315 = sphi 0, %s314
      %s331 = sphi 0, %s315
      %s337 = sphi 0, %s339
      %s340 = sphi 0, %s337
      %s341 = sphi 0, %s340
      %s357 = sphi 0, %s341
      %s363 = sphi 0, %s365
      %s366 = sphi 0, %s363
      %s367 = sphi 0, %s366
      %s383 = sphi 0, %s367
    $region4: #{transformer_forward.1} parent=1 // loop_header_branch
      %32 = sbr.rel (%p30) target = $region8
    $region5: #{transformer_forward.1} parent=1 // loop_body
      %s34 = ssub.s32 %s29, 1
      %s35 = ssub.s32 %s29, 2
      %s42 = sadd.s32 1, %s37
      %p43 = scmp.ge.s32.totalorder %s42, 2
      %s44 = scalar_select %p43, 0, %s42
      %s45 = sadd.s32 1, %s36
      %s46 = scalar_select %p43, %s45, %s36
      %p47 = scmp.ge.s32.totalorder %s46, 1
      %s48 = scalar_select %p47, 0, %s46
      %s49 = ssub.s32 %s36, %s48
      %p50 = scmp.eq.s32.totalorder %s49, 0
      %s52 = sadd.s32 %s51, 1
      %s53 = scalar_select %p50, %s51, %s52
      %p56 = pneg %p50
      %p57 = scmp.eq.s32.totalorder %s29, 1
      %p58 = por %p56, %p57
      %p59 = scmp.ne.s32.totalorder %s51, %s54
      %p60 = scmp.eq.s32.totalorder %s29, 0
      %p61 = por %p59, %p60
      %p62 = scmp.ne.s32.totalorder %s51, %s54
      %p63 = scmp.eq.s32.totalorder %s34, 1
      %p64 = por %p62, %p63
      %p65 = scmp.ne.s32.totalorder %s54, %s55
      %p66 = scmp.eq.s32.totalorder %s34, 0
      %p67 = por %p65, %p66
      %p68 = scmp.ne.s32.totalorder %s54, %s55
      %p69 = scmp.eq.s32.totalorder %s35, 1
      %p70 = por %p68, %p69
      %p72 = scmp.ne.s32.totalorder %s55, %s71
      %p73 = scmp.eq.s32.totalorder %s35, 0
      %p74 = por %p72, %p73
      %s75 = ssub.s32 %s37, %s44
      %p76 = scmp.eq.s32.totalorder %s75, 0
      %s78 = sadd.s32 %s77, 1
      %s79 = scalar_select %p76, %s77, %s78
      %p82 = pneg %p76
      %p83 = scmp.eq.s32.totalorder %s29, 1
      %p84 = por %p82, %p83
      %p85 = scmp.ne.s32.totalorder %s77, %s80
      %p86 = scmp.eq.s32.totalorder %s29, 0
      %p87 = por %p85, %p86
      %p88 = scmp.ne.s32.totalorder %s77, %s80
      %p89 = scmp.eq.s32.totalorder %s34, 1
      %p90 = por %p88, %p89
      %p91 = scmp.ne.s32.totalorder %s80, %s81
      %p92 = scmp.eq.s32.totalorder %s34, 0
      %p93 = por %p91, %p92
      %p94 = scmp.ne.s32.totalorder %s80, %s81
      %p95 = scmp.eq.s32.totalorder %s35, 1
      %p96 = por %p94, %p95
      %p98 = scmp.ne.s32.totalorder %s81, %s97
      %p99 = scmp.eq.s32.totalorder %s35, 0
      %p100 = por %p98, %p99
      %s101 = ssub.s32 %s37, %s44
      %p102 = scmp.eq.s32.totalorder %s101, 0
      %s104 = sadd.s32 %s103, 1
      %s105 = scalar_select %p102, %s103, %s104
      %p108 = pneg %p102
      %p109 = scmp.eq.s32.totalorder %s29, 1
      %p110 = por %p108, %p109
      %p111 = scmp.ne.s32.totalorder %s103, %s106
      %p112 = scmp.eq.s32.totalorder %s29, 0
      %p113 = por %p111, %p112
      %p114 = scmp.ne.s32.totalorder %s103, %s106
      %p115 = scmp.eq.s32.totalorder %s34, 1
      %p116 = por %p114, %p115
      %p117 = scmp.ne.s32.totalorder %s106, %s107
      %p118 = scmp.eq.s32.totalorder %s34, 0
      %p119 = por %p117, %p118
      %p120 = scmp.ne.s32.totalorder %s106, %s107
      %p121 = scmp.eq.s32.totalorder %s35, 1
      %p122 = por %p120, %p121
      %p124 = scmp.ne.s32.totalorder %s107, %s123
      %p125 = scmp.eq.s32.totalorder %s35, 0
      %p126 = por %p124, %p125
      %s127 = ssub.s32 %s37, %s44
      %p128 = scmp.eq.s32.totalorder %s127, 0
      %s130 = sadd.s32 %s129, 1
      %s131 = scalar_select %p128, %s129, %s130
      %p134 = pneg %p128
      %p135 = scmp.eq.s32.totalorder %s29, 1
      %p136 = por %p134, %p135
      %p137 = scmp.ne.s32.totalorder %s129, %s132
      %p138 = scmp.eq.s32.totalorder %s29, 0
      %p139 = por %p137, %p138
      %p140 = scmp.ne.s32.totalorder %s129, %s132
      %p141 = scmp.eq.s32.totalorder %s34, 1
      %p142 = por %p140, %p141
      %p143 = scmp.ne.s32.totalorder %s132, %s133
      %p144 = scmp.eq.s32.totalorder %s34, 0
      %p145 = por %p143, %p144
      %p146 = scmp.ne.s32.totalorder %s132, %s133
      %p147 = scmp.eq.s32.totalorder %s35, 1
      %p148 = por %p146, %p147
      %p150 = scmp.ne.s32.totalorder %s133, %s149
      %p151 = scmp.eq.s32.totalorder %s35, 0
      %p152 = por %p150, %p151
      %s153 = ssub.s32 %s37, %s44
      %p154 = scmp.eq.s32.totalorder %s153, 0
      %s156 = sadd.s32 %s155, 1
      %s157 = scalar_select %p154, %s155, %s156
      %p160 = pneg %p154
      %p161 = scmp.eq.s32.totalorder %s29, 1
      %p162 = por %p160, %p161
      %p163 = scmp.ne.s32.totalorder %s155, %s158
      %p164 = scmp.eq.s32.totalorder %s29, 0
      %p165 = por %p163, %p164
      %p166 = scmp.ne.s32.totalorder %s155, %s158
      %p167 = scmp.eq.s32.totalorder %s34, 1
      %p168 = por %p166, %p167
      %p169 = scmp.ne.s32.totalorder %s158, %s159
      %p170 = scmp.eq.s32.totalorder %s34, 0
      %p171 = por %p169, %p170
      %p172 = scmp.ne.s32.totalorder %s158, %s159
      %p173 = scmp.eq.s32.totalorder %s35, 1
      %p174 = por %p172, %p173
      %p176 = scmp.ne.s32.totalorder %s159, %s175
      %p177 = scmp.eq.s32.totalorder %s35, 0
      %p178 = por %p176, %p177
      %s179 = ssub.s32 %s37, %s44
      %p180 = scmp.eq.s32.totalorder %s179, 0
      %s182 = sadd.s32 %s181, 1
      %s183 = scalar_select %p180, %s181, %s182
      %p186 = pneg %p180
      %p187 = scmp.eq.s32.totalorder %s29, 1
      %p188 = por %p186, %p187
      %p189 = scmp.ne.s32.totalorder %s181, %s184
      %p190 = scmp.eq.s32.totalorder %s29, 0
      %p191 = por %p189, %p190
      %p192 = scmp.ne.s32.totalorder %s181, %s184
      %p193 = scmp.eq.s32.totalorder %s34, 1
      %p194 = por %p192, %p193
      %p195 = scmp.ne.s32.totalorder %s184, %s185
      %p196 = scmp.eq.s32.totalorder %s34, 0
      %p197 = por %p195, %p196
      %p198 = scmp.ne.s32.totalorder %s184, %s185
      %p199 = scmp.eq.s32.totalorder %s35, 1
      %p200 = por %p198, %p199
      %p202 = scmp.ne.s32.totalorder %s185, %s201
      %p203 = scmp.eq.s32.totalorder %s35, 0
      %p204 = por %p202, %p203
      %s205 = ssub.s32 %s37, %s44
      %p206 = scmp.eq.s32.totalorder %s205, 0
      %s208 = sadd.s32 %s207, 1
      %s209 = scalar_select %p206, %s207, %s208
      %p212 = pneg %p206
      %p213 = scmp.eq.s32.totalorder %s29, 1
      %p214 = por %p212, %p213
      %p215 = scmp.ne.s32.totalorder %s207, %s210
      %p216 = scmp.eq.s32.totalorder %s29, 0
      %p217 = por %p215, %p216
      %p218 = scmp.ne.s32.totalorder %s207, %s210
      %p219 = scmp.eq.s32.totalorder %s34, 1
      %p220 = por %p218, %p219
      %p221 = scmp.ne.s32.totalorder %s210, %s211
      %p222 = scmp.eq.s32.totalorder %s34, 0
      %p223 = por %p221, %p222
      %p224 = scmp.ne.s32.totalorder %s210, %s211
      %p225 = scmp.eq.s32.totalorder %s35, 1
      %p226 = por %p224, %p225
      %p228 = scmp.ne.s32.totalorder %s211, %s227
      %p229 = scmp.eq.s32.totalorder %s35, 0
      %p230 = por %p228, %p229
      %s231 = ssub.s32 %s37, %s44
      %p232 = scmp.eq.s32.totalorder %s231, 0
      %s234 = sadd.s32 %s233, 1
      %s235 = scalar_select %p232, %s233, %s234
      %p238 = pneg %p232
      %p239 = scmp.eq.s32.totalorder %s29, 1
      %p240 = por %p238, %p239
      %p241 = scmp.ne.s32.totalorder %s233, %s236
      %p242 = scmp.eq.s32.totalorder %s29, 0
      %p243 = por %p241, %p242
      %p244 = scmp.ne.s32.totalorder %s233, %s236
      %p245 = scmp.eq.s32.totalorder %s34, 1
      %p246 = por %p244, %p245
      %p247 = scmp.ne.s32.totalorder %s236, %s237
      %p248 = scmp.eq.s32.totalorder %s34, 0
      %p249 = por %p247, %p248
      %p250 = scmp.ne.s32.totalorder %s236, %s237
      %p251 = scmp.eq.s32.totalorder %s35, 1
      %p252 = por %p250, %p251
      %p254 = scmp.ne.s32.totalorder %s237, %s253
      %p255 = scmp.eq.s32.totalorder %s35, 0
      %p256 = por %p254, %p255
      %s257 = ssub.s32 %s37, %s44
      %p258 = scmp.eq.s32.totalorder %s257, 0
      %s260 = sadd.s32 %s259, 1
      %s261 = scalar_select %p258, %s259, %s260
      %p264 = pneg %p258
      %p265 = scmp.eq.s32.totalorder %s29, 1
      %p266 = por %p264, %p265
      %p267 = scmp.ne.s32.totalorder %s259, %s262
      %p268 = scmp.eq.s32.totalorder %s29, 0
      %p269 = por %p267, %p268
      %p270 = scmp.ne.s32.totalorder %s259, %s262
      %p271 = scmp.eq.s32.totalorder %s34, 1
      %p272 = por %p270, %p271
      %p273 = scmp.ne.s32.totalorder %s262, %s263
      %p274 = scmp.eq.s32.totalorder %s34, 0
      %p275 = por %p273, %p274
      %p276 = scmp.ne.s32.totalorder %s262, %s263
      %p277 = scmp.eq.s32.totalorder %s35, 1
      %p278 = por %p276, %p277
      %p280 = scmp.ne.s32.totalorder %s263, %s279
      %p281 = scmp.eq.s32.totalorder %s35, 0
      %p282 = por %p280, %p281
      %s283 = ssub.s32 %s37, %s44
      %p284 = scmp.eq.s32.totalorder %s283, 0
      %s286 = sadd.s32 %s285, 1
      %s287 = scalar_select %p284, %s285, %s286
      %p290 = pneg %p284
      %p291 = scmp.eq.s32.totalorder %s29, 1
      %p292 = por %p290, %p291
      %p293 = scmp.ne.s32.totalorder %s285, %s288
      %p294 = scmp.eq.s32.totalorder %s29, 0
      %p295 = por %p293, %p294
      %p296 = scmp.ne.s32.totalorder %s285, %s288
      %p297 = scmp.eq.s32.totalorder %s34, 1
      %p298 = por %p296, %p297
      %p299 = scmp.ne.s32.totalorder %s288, %s289
      %p300 = scmp.eq.s32.totalorder %s34, 0
      %p301 = por %p299, %p300
      %p302 = scmp.ne.s32.totalorder %s288, %s289
      %p303 = scmp.eq.s32.totalorder %s35, 1
      %p304 = por %p302, %p303
      %p306 = scmp.ne.s32.totalorder %s289, %s305
      %p307 = scmp.eq.s32.totalorder %s35, 0
      %p308 = por %p306, %p307
      %s309 = ssub.s32 %s37, %s44
      %p310 = scmp.eq.s32.totalorder %s309, 0
      %s312 = sadd.s32 %s311, 1
      %s313 = scalar_select %p310, %s311, %s312
      %p316 = pneg %p310
      %p317 = scmp.eq.s32.totalorder %s29, 1
      %p318 = por %p316, %p317
      %p319 = scmp.ne.s32.totalorder %s311, %s314
      %p320 = scmp.eq.s32.totalorder %s29, 0
      %p321 = por %p319, %p320
      %p322 = scmp.ne.s32.totalorder %s311, %s314
      %p323 = scmp.eq.s32.totalorder %s34, 1
      %p324 = por %p322, %p323
      %p325 = scmp.ne.s32.totalorder %s314, %s315
      %p326 = scmp.eq.s32.totalorder %s34, 0
      %p327 = por %p325, %p326
      %p328 = scmp.ne.s32.totalorder %s314, %s315
      %p329 = scmp.eq.s32.totalorder %s35, 1
      %p330 = por %p328, %p329
      %p332 = scmp.ne.s32.totalorder %s315, %s331
      %p333 = scmp.eq.s32.totalorder %s35, 0
      %p334 = por %p332, %p333
      %s335 = ssub.s32 %s37, %s44
      %p336 = scmp.eq.s32.totalorder %s335, 0
      %s338 = sadd.s32 %s337, 1
      %s339 = scalar_select %p336, %s337, %s338
      %p342 = pneg %p336
      %p343 = scmp.eq.s32.totalorder %s29, 1
      %p344 = por %p342, %p343
      %p345 = scmp.ne.s32.totalorder %s337, %s340
      %p346 = scmp.eq.s32.totalorder %s29, 0
      %p347 = por %p345, %p346
      %p348 = scmp.ne.s32.totalorder %s337, %s340
      %p349 = scmp.eq.s32.totalorder %s34, 1
      %p350 = por %p348, %p349
      %p351 = scmp.ne.s32.totalorder %s340, %s341
      %p352 = scmp.eq.s32.totalorder %s34, 0
      %p353 = por %p351, %p352
      %p354 = scmp.ne.s32.totalorder %s340, %s341
      %p355 = scmp.eq.s32.totalorder %s35, 1
      %p356 = por %p354, %p355
      %p358 = scmp.ne.s32.totalorder %s341, %s357
      %p359 = scmp.eq.s32.totalorder %s35, 0
      %p360 = por %p358, %p359
      %s361 = ssub.s32 %s36, %s48
      %p362 = scmp.eq.s32.totalorder %s361, 0
      %s364 = sadd.s32 %s363, 1
      %s365 = scalar_select %p362, %s363, %s364
      %p368 = pneg %p362
      %p369 = scmp.eq.s32.totalorder %s29, 1
      %p370 = por %p368, %p369
      %p371 = scmp.ne.s32.totalorder %s363, %s366
      %p372 = scmp.eq.s32.totalorder %s29, 0
      %p373 = por %p371, %p372
      %p374 = scmp.ne.s32.totalorder %s363, %s366
      %p375 = scmp.eq.s32.totalorder %s34, 1
      %p376 = por %p374, %p375
      %p377 = scmp.ne.s32.totalorder %s366, %s367
      %p378 = scmp.eq.s32.totalorder %s34, 0
      %p379 = por %p377, %p378
      %p380 = scmp.ne.s32.totalorder %s366, %s367
      %p381 = scmp.eq.s32.totalorder %s35, 1
      %p382 = por %p380, %p381
      %p384 = scmp.ne.s32.totalorder %s367, %s383
      %p385 = scmp.eq.s32.totalorder %s35, 0
      %p386 = por %p384, %p385
      %p387 = scmp.le.s32.totalorder 1, %s29
      %p388 = scmp.lt.s32.totalorder %s29, 3
      %p389 = pnand %p387, %p388
      %p390 = pneg %p389
      // Predicated region
      $region9: #{transformer_forward.1} parent=5 // pred_check
        _
      $region10: #{transformer_forward.1} parent=5 // pred_check_branch
        %392 = sbr.rel (%p389) target = $region12
      $region11: #{transformer_forward.1} parent=5 // pred_region
        %s393 = ssub.s32 %s29, 1
        // Predicated region
        $region13: #{transformer_forward.1} parent=11 // pred_check
          %p394 = pneg %p67
        $region14: #{transformer_forward.1} parent=11 // pred_check_branch
          %396 = sbr.rel (%p394) target = $region16
        $region15: #{transformer_forward.1} parent=11 // pred_region
          %s398 = ssub.s32 256, 256
          %399 = vsyncadd [#allocation6], %s398
          %s400 = smul.addr %s38, 2
          %s401 = smul.addr %s400, 128
          %s402 = scalar_lea.hbm %s0, %s401
          %s403 = sshll.u32 [#allocation5], 4
          %s404 = int_to_ptr.vmem [resolvable:$true] %s403
          %409 = dma.hbm_to_vmem [thread:$0]  %s402, 256, %s404, [#allocation6], 128, 128, 8
        $region16: #{transformer_forward.1} parent=11 // pred_fallthru
          _
      $region12: #{transformer_forward.1} parent=5 // pred_fallthru
        _
      %p410 = scmp.lt.s32.totalorder %s29, 2
      // Predicated region
      $region17: #{transformer_forward.1} parent=5 // pred_check
        %p411 = pneg %p410
      $region18: #{transformer_forward.1} parent=5 // pred_check_branch
        %413 = sbr.rel (%p411) target = $region20
      $region19: #{transformer_forward.1} parent=5 // pred_region
        // Predicated region
        $region21: #{transformer_forward.1} parent=19 // pred_check
          %p414 = pneg %p87
        $region22: #{transformer_forward.1} parent=19 // pred_check_branch
          %416 = sbr.rel (%p414) target = $region24
        $region23: #{transformer_forward.1} parent=19 // pred_region
          %p417 = scmp.lt.s32.totalorder %s37, 1
          %s418 = scalar_select %p417, %s37, 1
          %s419 = scalar_lea.vmem %s1, %s418
        $region24: #{transformer_forward.1} parent=19 // pred_fallthru
          _
        // Predicated region
        $region25: #{transformer_forward.1} parent=19 // pred_check
          %p420 = pneg %p113
        $region26: #{transformer_forward.1} parent=19 // pred_check_branch
          %422 = sbr.rel (%p420) target = $region28
        $region27: #{transformer_forward.1} parent=19 // pred_region
          %p423 = scmp.lt.s32.totalorder %s37, 1
          %s424 = scalar_select %p423, %s37, 1
          %s425 = scalar_lea.vmem %s2, %s424
        $region28: #{transformer_forward.1} parent=19 // pred_fallthru
          _
        // Predicated region
        $region29: #{transformer_forward.1} parent=19 // pred_check
          %p426 = pneg %p139
        $region30: #{transformer_forward.1} parent=19 // pred_check_branch
          %428 = sbr.rel (%p426) target = $region32
        $region31: #{transformer_forward.1} parent=19 // pred_region
          %p429 = scmp.lt.s32.totalorder %s37, 1
          %s430 = scalar_select %p429, %s37, 1
          %s431 = smul.addr %s430, 4
          %s432 = smul.addr %s431, 4
          %s433 = scalar_lea.vmem %s3, %s432
        $region32: #{transformer_forward.1} parent=19 // pred_fallthru
          _
        // Predicated region
        $region33: #{transformer_forward.1} parent=19 // pred_check
          %p434 = pneg %p165
        $region34: #{transformer_forward.1} parent=19 // pred_check_branch
          %436 = sbr.rel (%p434) target = $region36
        $region35: #{transformer_forward.1} parent=19 // pred_region
          %p437 = scmp.lt.s32.totalorder %s37, 1
          %s438 = scalar_select %p437, %s37, 1
          %s439 = smul.addr %s438, 4
          %s440 = smul.addr %s439, 4
          %s441 = scalar_lea.vmem %s4, %s440
        $region36: #{transformer_forward.1} parent=19 // pred_fallthru
          _
        // Predicated region
        $region37: #{transformer_forward.1} parent=19 // pred_check
          %p442 = pneg %p191
        $region38: #{transformer_forward.1} parent=19 // pred_check_branch
          %444 = sbr.rel (%p442) target = $region40
        $region39: #{transformer_forward.1} parent=19 // pred_region
          %s445 = sand.u32 %s29, 1
          %s446 = scalar_lea.sflag [#allocation9], %s445
          %s447 = sand.u32 %s181, 1
          %s448 = scalar_lea.vmem [#allocation8], %s447
          %s450 = ssub.s32 16, 16
          %451 = vsyncadd %s446, %s450
          %s452 = smul.addr %s37, 16
          %s453 = scalar_lea.hbm %s5, %s452
          %s455 = sshll.u32 %s448, 4
          %s456 = int_to_ptr.vmem [resolvable:$true] %s455
          %458 = dma.hbm_to_vmem [thread:$0]  %s453, 16, %s456, %s446
        $region40: #{transformer_forward.1} parent=19 // pred_fallthru
          _
        // Predicated region
        $region41: #{transformer_forward.1} parent=19 // pred_check
          %p459 = pneg %p217
        $region42: #{transformer_forward.1} parent=19 // pred_check_branch
          %461 = sbr.rel (%p459) target = $region44
        $region43: #{transformer_forward.1} parent=19 // pred_region
          %s462 = sand.u32 %s29, 1
          %s463 = scalar_lea.sflag [#allocation9], %s462
          %s464 = sand.u32 %s207, 1
          %s465 = scalar_lea.vmem [#allocation10], %s464
          %s467 = ssub.s32 16, 16
          %468 = vsyncadd %s463, %s467
          %s469 = smul.addr %s37, 16
          %s470 = scalar_lea.hbm %s6, %s469
          %s472 = sshll.u32 %s465, 4
          %s473 = int_to_ptr.vmem [resolvable:$true] %s472
          %475 = dma.hbm_to_vmem [thread:$0]  %s470, 16, %s473, %s463
        $region44: #{transformer_forward.1} parent=19 // pred_fallthru
          _
        // Predicated region
        $region45: #{transformer_forward.1} parent=19 // pred_check
          %p476 = pneg %p243
        $region46: #{transformer_forward.1} parent=19 // pred_check_branch
          %478 = sbr.rel (%p476) target = $region48
        $region47: #{transformer_forward.1} parent=19 // pred_region
          %s479 = sand.u32 %s29, 1
          %s480 = scalar_lea.sflag [#allocation12], %s479
          %s481 = sand.u32 %s233, 1
          %s482 = scalar_lea.vmem [#allocation11], %s481
          %s484 = ssub.s32 16, 16
          %485 = vsyncadd %s480, %s484
          %s486 = smul.addr %s37, 16
          %s487 = scalar_lea.hbm %s7, %s486
          %s489 = sshll.u32 %s482, 4
          %s490 = int_to_ptr.vmem [resolvable:$true] %s489
          %492 = dma.hbm_to_vmem [thread:$0]  %s487, 16, %s490, %s480
        $region48: #{transformer_forward.1} parent=19 // pred_fallthru
          _
        // Predicated region
        $region49: #{transformer_forward.1} parent=19 // pred_check
          %p493 = pneg %p269
        $region50: #{transformer_forward.1} parent=19 // pred_check_branch
          %495 = sbr.rel (%p493) target = $region52
        $region51: #{transformer_forward.1} parent=19 // pred_region
          %p496 = scmp.lt.s32.totalorder %s37, 1
          %s497 = scalar_select %p496, %s37, 1
          %s498 = smul.addr %s497, 4
          %s499 = smul.addr %s498, 4
          %s500 = scalar_lea.vmem %s8, %s499
        $region52: #{transformer_forward.1} parent=19 // pred_fallthru
          _
        // Predicated region
        $region53: #{transformer_forward.1} parent=19 // pred_check
          %p501 = pneg %p295
        $region54: #{transformer_forward.1} parent=19 // pred_check_branch
          %503 = sbr.rel (%p501) target = $region56
        $region55: #{transformer_forward.1} parent=19 // pred_region
          %s504 = sand.u32 %s29, 1
          %s505 = scalar_lea.sflag [#allocation12], %s504
          %s506 = sand.u32 %s285, 1
          %s507 = scalar_lea.vmem [#allocation13], %s506
          %s509 = ssub.s32 16, 16
          %510 = vsyncadd %s505, %s509
          %s511 = smul.addr %s37, 16
          %s512 = scalar_lea.hbm %s9, %s511
          %s514 = sshll.u32 %s507, 4
          %s515 = int_to_ptr.vmem [resolvable:$true] %s514
          %517 = dma.hbm_to_vmem [thread:$0]  %s512, 16, %s515, %s505
        $region56: #{transformer_forward.1} parent=19 // pred_fallthru
          _
        // Predicated region
        $region57: #{transformer_forward.1} parent=19 // pred_check
          %p518 = pneg %p321
        $region58: #{transformer_forward.1} parent=19 // pred_check_branch
          %520 = sbr.rel (%p518) target = $region60
        $region59: #{transformer_forward.1} parent=19 // pred_region
          %p521 = scmp.lt.s32.totalorder %s37, 1
          %s522 = scalar_select %p521, %s37, 1
          %s523 = smul.addr %s522, 8
          %s524 = smul.addr %s523, 4
          %s525 = scalar_lea.vmem %s10, %s524
        $region60: #{transformer_forward.1} parent=19 // pred_fallthru
          _
        // Predicated region
        $region61: #{transformer_forward.1} parent=19 // pred_check
          %p526 = pneg %p347
        $region62: #{transformer_forward.1} parent=19 // pred_check_branch
          %528 = sbr.rel (%p526) target = $region64
        $region63: #{transformer_forward.1} parent=19 // pred_region
          %s529 = sand.u32 %s337, 1
          %s530 = scalar_lea.sflag [#allocation15], %s529
          %s531 = sand.u32 %s337, 1
          %s532 = scalar_lea.vmem [#allocation14], %s531
          %s534 = ssub.s32 16, 16
          %535 = vsyncadd %s530, %s534
          %s536 = smul.addr %s37, 16
          %s537 = scalar_lea.hbm %s11, %s536
          %s539 = sshll.u32 %s532, 4
          %s540 = int_to_ptr.vmem [resolvable:$true] %s539
          %542 = dma.hbm_to_vmem [thread:$0]  %s537, 16, %s540, %s530
        $region64: #{transformer_forward.1} parent=19 // pred_fallthru
          _
      $region20: #{transformer_forward.1} parent=5 // pred_fallthru
        _
      %p543 = scmp.le.s32.totalorder 1, %s29
      %p544 = scmp.lt.s32.totalorder %s29, 3
      %p545 = pnand %p543, %p544
      %p546 = pneg %p545
      // Predicated region
      $region65: #{transformer_forward.1} parent=5 // pred_check
        _
      $region66: #{transformer_forward.1} parent=5 // pred_check_branch
        %548 = sbr.rel (%p545) target = $region68
      $region67: #{transformer_forward.1} parent=5 // pred_region
        %s549 = ssub.s32 %s29, 1
        // Predicated region
        $region69: #{transformer_forward.1} parent=67 // pred_check
          %p550 = pneg %p67
        $region70: #{transformer_forward.1} parent=67 // pred_check_branch
          %552 = sbr.rel (%p550) target = $region72
        $region71: #{transformer_forward.1} parent=67 // pred_region
          %553 = dma.done [#allocation6], 256
        $region72: #{transformer_forward.1} parent=67 // pred_fallthru
          _
        %s554 = sand.u32 %s34, 1
        %s555 = scalar_lea.sflag [#allocation9], %s554
        %s556 = sand.u32 %s184, 1
        %s557 = scalar_lea.vmem [#allocation8], %s556
        // Predicated region
        $region73: #{transformer_forward.1} parent=67 // pred_check
          %p558 = pneg %p197
        $region74: #{transformer_forward.1} parent=67 // pred_check_branch
          %560 = sbr.rel (%p558) target = $region76
        $region75: #{transformer_forward.1} parent=67 // pred_region
          %561 = dma.done %s555, 16
        $region76: #{transformer_forward.1} parent=67 // pred_fallthru
          _
        %s562 = sand.u32 %s34, 1
        %s563 = scalar_lea.sflag [#allocation9], %s562
        %s564 = sand.u32 %s210, 1
        %s565 = scalar_lea.vmem [#allocation10], %s564
        // Predicated region
        $region77: #{transformer_forward.1} parent=67 // pred_check
          %p566 = pneg %p223
        $region78: #{transformer_forward.1} parent=67 // pred_check_branch
          %568 = sbr.rel (%p566) target = $region80
        $region79: #{transformer_forward.1} parent=67 // pred_region
          %569 = dma.done %s563, 16
        $region80: #{transformer_forward.1} parent=67 // pred_fallthru
          _
        %s570 = sand.u32 %s34, 1
        %s571 = scalar_lea.sflag [#allocation12], %s570
        %s572 = sand.u32 %s236, 1
        %s573 = scalar_lea.vmem [#allocation11], %s572
        // Predicated region
        $region81: #{transformer_forward.1} parent=67 // pred_check
          %p574 = pneg %p249
        $region82: #{transformer_forward.1} parent=67 // pred_check_branch
          %576 = sbr.rel (%p574) target = $region84
        $region83: #{transformer_forward.1} parent=67 // pred_region
          %577 = dma.done %s571, 16
        $region84: #{transformer_forward.1} parent=67 // pred_fallthru
          _
        %s578 = sand.u32 %s34, 1
        %s579 = scalar_lea.sflag [#allocation12], %s578
        %s580 = sand.u32 %s288, 1
        %s581 = scalar_lea.vmem [#allocation13], %s580
        // Predicated region
        $region85: #{transformer_forward.1} parent=67 // pred_check
          %p582 = pneg %p301
        $region86: #{transformer_forward.1} parent=67 // pred_check_branch
          %584 = sbr.rel (%p582) target = $region88
        $region87: #{transformer_forward.1} parent=67 // pred_region
          %585 = dma.done %s579, 16
        $region88: #{transformer_forward.1} parent=67 // pred_fallthru
          _
        %s586 = sand.u32 %s340, 1
        %s587 = scalar_lea.sflag [#allocation15], %s586
        %s588 = sand.u32 %s340, 1
        %s589 = scalar_lea.vmem [#allocation14], %s588
        // Predicated region
        $region89: #{transformer_forward.1} parent=67 // pred_check
          %p590 = pneg %p353
        $region90: #{transformer_forward.1} parent=67 // pred_check_branch
          %592 = sbr.rel (%p590) target = $region92
        $region91: #{transformer_forward.1} parent=67 // pred_region
          %593 = dma.done %s587, 16
        $region92: #{transformer_forward.1} parent=67 // pred_fallthru
          _
        %p594 = pneg %p67
        %p595 = pneg %p64
        %p596 = scmp.lt.s32.totalorder %s39, 1
        %s597 = scalar_select %p596, %s39, 1
        %s598 = scalar_lea.vmem %s1, %s597
        %p599 = pneg %p93
        %p600 = pneg %p90
        %p601 = scmp.lt.s32.totalorder %s39, 1
        %s602 = scalar_select %p601, %s39, 1
        %s603 = scalar_lea.vmem %s2, %s602
        %p604 = pneg %p119
        %p605 = pneg %p116
        %p606 = scmp.lt.s32.totalorder %s39, 1
        %s607 = scalar_select %p606, %s39, 1
        %s608 = smul.addr %s607, 4
        %s609 = smul.addr %s608, 4
        %s610 = scalar_lea.vmem %s3, %s609
        %p611 = pneg %p145
        %p612 = pneg %p142
        %p613 = scmp.lt.s32.totalorder %s39, 1
        %s614 = scalar_select %p613, %s39, 1
        %s615 = smul.addr %s614, 4
        %s616 = smul.addr %s615, 4
        %s617 = scalar_lea.vmem %s4, %s616
        %p618 = pneg %p171
        %p619 = pneg %p168
        %s620 = sand.u32 %s34, 1
        %s621 = scalar_lea.sflag [#allocation9], %s620
        %s622 = sand.u32 %s184, 1
        %s623 = scalar_lea.vmem [#allocation8], %s622
        %p624 = pneg %p197
        %p625 = pneg %p194
        %s626 = sand.u32 %s34, 1
        %s627 = scalar_lea.sflag [#allocation9], %s626
        %s628 = sand.u32 %s210, 1
        %s629 = scalar_lea.vmem [#allocation10], %s628
        %p630 = pneg %p223
        %p631 = pneg %p220
        %s632 = sand.u32 %s34, 1
        %s633 = scalar_lea.sflag [#allocation12], %s632
        %s634 = sand.u32 %s236, 1
        %s635 = scalar_lea.vmem [#allocation11], %s634
        %p636 = pneg %p249
        %p637 = pneg %p246
        %p638 = scmp.lt.s32.totalorder %s39, 1
        %s639 = scalar_select %p638, %s39, 1
        %s640 = smul.addr %s639, 4
        %s641 = smul.addr %s640, 4
        %s642 = scalar_lea.vmem %s8, %s641
        %p643 = pneg %p275
        %p644 = pneg %p272
        %s645 = sand.u32 %s34, 1
        %s646 = scalar_lea.sflag [#allocation12], %s645
        %s647 = sand.u32 %s288, 1
        %s648 = scalar_lea.vmem [#allocation13], %s647
        %p649 = pneg %p301
        %p650 = pneg %p298
        %p651 = scmp.lt.s32.totalorder %s39, 1
        %s652 = scalar_select %p651, %s39, 1
        %s653 = smul.addr %s652, 8
        %s654 = smul.addr %s653, 4
        %s655 = scalar_lea.vmem %s10, %s654
        %p656 = pneg %p327
        %p657 = pneg %p324
        %s658 = sand.u32 %s340, 1
        %s659 = scalar_lea.sflag [#allocation15], %s658
        %s660 = sand.u32 %s340, 1
        %s661 = scalar_lea.vmem [#allocation14], %s660
        %p662 = pneg %p353
        %p663 = pneg %p350
        %p664 = pneg %p379
        %p665 = pneg %p376
        %p666 = scmp.lt.s32.totalorder %s39, 1
        %s667 = scalar_select %p666, %s39, 1
        %s668 = scalar_lea.vmem %s1, %s667
        %p669 = scmp.lt.s32.totalorder %s39, 1
        %s670 = scalar_select %p669, %s39, 1
        %s671 = scalar_lea.vmem %s2, %s670
        %p672 = scmp.lt.s32.totalorder %s39, 1
        %s673 = scalar_select %p672, %s39, 1
        %s674 = smul.addr %s673, 4
        %s675 = smul.addr %s674, 4
        %s676 = scalar_lea.vmem %s3, %s675
        %p677 = scmp.lt.s32.totalorder %s39, 1
        %s678 = scalar_select %p677, %s39, 1
        %s679 = smul.addr %s678, 4
        %s680 = smul.addr %s679, 4
        %s681 = scalar_lea.vmem %s4, %s680
        %p682 = scmp.lt.s32.totalorder %s39, 1
        %s683 = scalar_select %p682, %s39, 1
        %s684 = smul.addr %s683, 4
        %s685 = smul.addr %s684, 4
        %s686 = scalar_lea.vmem %s8, %s685
        %p687 = scmp.lt.s32.totalorder %s39, 1
        %s688 = scalar_select %p687, %s39, 1
        %s689 = smul.addr %s688, 8
        %s690 = smul.addr %s689, 4
        %s691 = scalar_lea.vmem %s10, %s690
        %p693 = scmp.eq.s32.totalorder %s39, 0
        // Predicated region
        $region93: #{transformer_forward.1} parent=67 // pred_check
          %p694 = pneg %p693
        $region94: #{transformer_forward.1} parent=67 // pred_check_branch
          %696 = sbr.rel (%p694) target = $region96
        $region95: #{transformer_forward.1} parent=67 // pred_region
          %v697 = vld [vmem:[#allocation5] sm:$0xff]
          %v698 = vld [vmem:[#allocation5 + $0x8] sm:$0xff]
          %vm699 = vcmask 261120
          %700 = vst.msk [vmem:[#allocation2] sm:$0xff] %vm699, %v697
          %701 = vst.msk [vmem:[#allocation2 + $0x8] sm:$0xff] %vm699, %v698
        $region96: #{transformer_forward.1} parent=67 // pred_fallthru
          _
        %v702 = vld [vmem:[#allocation2] sm:$0xff]
        %v703 = vld [vmem:[#allocation2 + $0x8] sm:$0xff]
        %vm704 = vcmask 261120
        %v705 = vsel %vm704, %v702, 0.0
        %706 = vadd.xlane.f32.xlu0 %v705
        %v707 = vpop.xlane.xlu0 %706
        %v708 = vsel %vm704, %v703, 0.0
        %709 = vadd.xlane.f32.xlu0 %v708
        %v710 = vpop.xlane.xlu0 %709
        %v711 = vrcp.pop 32.0
        %v712 = vmul.f32 %v707, %v711
        %v713 = vmul.f32 %v710, %v711
        %v714 = vsub.f32 %v702, %v712
        %v715 = vsub.f32 %v703, %v713
        %v716 = vmul.f32 %v714, %v714
        %v717 = vmul.f32 %v715, %v715
        %v718 = vsel %vm704, %v716, 0.0
        %719 = vadd.xlane.f32.xlu0 %v718
        %v720 = vpop.xlane.xlu0 %719
        %v721 = vsel %vm704, %v717, 0.0
        %722 = vadd.xlane.f32.xlu0 %v721
        %v723 = vpop.xlane.xlu0 %722
        %v724 = vmul.f32 %v720, %v711
        %v725 = vmul.f32 %v723, %v711
        %v726 = vadd.f32 %v724, 1e-05
        %v727 = vadd.f32 %v725, 1e-05
        %v728 = vrsqrt.pop %v726
        %v729 = vrsqrt.pop %v727
        %v730 = vmul.f32 %v714, %v728
        %v731 = vmul.f32 %v715, %v729
        %v732 = vld [vmem:[%s668] sm:$0x1]
        %v734 = vlaneseq
        %v735 = vshrl.u32 %v734, 7
        %v736 = vsub.s32 0, %v735
        %v737 = vrot.slane %v732, %v736
        %v739 = vmul.f32 %v730, %v737
        %v740 = vmul.f32 %v731, %v737
        %v741 = vld [vmem:[%s671] sm:$0x1]
        %v743 = vlaneseq
        %v744 = vshrl.u32 %v743, 7
        %v745 = vsub.s32 0, %v744
        %v746 = vrot.slane %v741, %v745
        %v748 = vadd.f32 %v739, %v746
        %v749 = vadd.f32 %v740, %v746
        %v750 = vpack.c.bf16 %v749, %v748
        %v751 = vld [vmem:[%s676] sm:$0xf]
        %v752 = vld [vmem:[%s676 + $0x4] sm:$0xf]
        %v753 = vld [vmem:[%s676 + $0x8] sm:$0xf]
        %v754 = vld [vmem:[%s676 + $0xc] sm:$0xf]
        %v759 = vunpack.c.l.b16 %v751
        %v760 = vunpack.c.l.b16 %v752
        %v761 = vunpack.c.l.b16 %v753
        %v762 = vunpack.c.l.b16 %v754
        %v763 = vpack.c.b16 %v760, %v759
        %v764 = vpack.c.b16 %v762, %v761
        %v768 = vsel %vm704, %v750, 0
        %770 = vmatprep.subr.bf16.mxu0 0
        %771 = vmatpush1.bf16.msra.mxu0 %v763
        %772 = vmatprep.subr.bf16.mxu0 0
        %773 = vmatpush1.bf16.msra.mxu0 %v764
        %774 = vmatprep.subr.bf16.mxu0 0
        %775 = vmatpush1.bf16.msra.mxu0 0
        %776 = vmatprep.subr.bf16.mxu0 0
        %777 = vmatpush1.bf16.msra.mxu0 0
        %778 = vmatprep.subr.bf16.mxu0 0
        %779 = vmatpush1.bf16.msra.mxu0 0
        %780 = vmatprep.subr.bf16.mxu0 0
        %781 = vmatpush1.bf16.msra.mxu0 0
        %782 = vmatprep.subr.bf16.mxu0 0
        %783 = vmatpush1.bf16.msra.mxu0 0
        %784 = vmatprep.subr.bf16.mxu0 0
        %785 = vmatpush1.bf16.msra.mxu0 0
        %786 = vmatprep.subr.bf16.mxu0 0
        %787 = vmatpush1.bf16.msra.mxu0 0
        %788 = vmatprep.subr.bf16.mxu0 0
        %789 = vmatpush1.bf16.msra.mxu0 0
        %790 = vmatprep.subr.bf16.mxu0 0
        %791 = vmatpush1.bf16.msra.mxu0 0
        %792 = vmatprep.subr.bf16.mxu0 0
        %793 = vmatpush1.bf16.msra.mxu0 0
        %794 = vmatprep.subr.bf16.mxu0 0
        %795 = vmatpush1.bf16.msra.mxu0 0
        %796 = vmatprep.subr.bf16.mxu0 0
        %797 = vmatpush1.bf16.msra.mxu0 0
        %798 = vmatprep.subr.bf16.mxu0 0
        %799 = vmatpush1.bf16.msra.mxu0 0
        %800 = vmatprep.subr.bf16.mxu0 0
        %801 = vmatpush1.bf16.msra.mxu0 0
        %802 = vmatprep.mubr.bf16.mxu0 0
        %803 = vmatmul.mubr.bf16.gmra.mrb[0].mxu0 %v768
        %v804 = vpop.f32.mrb[0].mxu0
        %v805 = vadd.f32 0.0, %v804
        %v806 = vpop.f32.mrb[0].mxu0
        %v807 = vpop.f32.mrb[0].mxu0
        %v808 = vadd.f32 0.0, %v807
        %v809 = vpop.f32.mrb[0].mxu0
        %810 = vdwg.mxu0
        %v811 = vpack.c.bf16 %v808, %v805
        %vm812 = vcmask 785408
        %813 = vst.msk [vmem:[#allocation3] sm:$0xff] %vm812, %v811
        %v814 = vld [vmem:[#allocation3] sm:$0xf]
        %816 = vrot.lane.b32.xlu0 %v814, 96
        %v817 = vpop.permute.xlu0 %816
        %vm818 = vcmask 64512
        %v820 = vsel %vm818, %v814, 0
        %v823 = vsel %vm818, %v817, 0
        %825 = vmatprep.subr.bf16.mxu0 0
        %826 = vmatpush1.bf16.xpose.msra.mxu0 %v823
        %827 = vmatprep.subr.bf16.mxu0 0
        %828 = vmatpush1.bf16.xpose.msra.mxu0 0
        %829 = vmatprep.subr.bf16.mxu0 0
        %830 = vmatpush1.bf16.xpose.msra.mxu0 0
        %831 = vmatprep.subr.bf16.mxu0 0
        %832 = vmatpush1.bf16.xpose.msra.mxu0 0
        %833 = vmatprep.subr.bf16.mxu0 0
        %834 = vmatpush1.bf16.xpose.msra.mxu0 0
        %835 = vmatprep.subr.bf16.mxu0 0
        %836 = vmatpush1.bf16.xpose.msra.mxu0 0
        %837 = vmatprep.subr.bf16.mxu0 0
        %838 = vmatpush1.bf16.xpose.msra.mxu0 0
        %839 = vmatprep.subr.bf16.mxu0 0
        %840 = vmatpush1.bf16.xpose.msra.mxu0 0
        %841 = vmatprep.subr.bf16.mxu0 0
        %842 = vmatpush1.bf16.xpose.msra.mxu0 0
        %843 = vmatprep.subr.bf16.mxu0 0
        %844 = vmatpush1.bf16.xpose.msra.mxu0 0
        %845 = vmatprep.subr.bf16.mxu0 0
        %846 = vmatpush1.bf16.xpose.msra.mxu0 0
        %847 = vmatprep.subr.bf16.mxu0 0
        %848 = vmatpush1.bf16.xpose.msra.mxu0 0
        %849 = vmatprep.subr.bf16.mxu0 0
        %850 = vmatpush1.bf16.xpose.msra.mxu0 0
        %851 = vmatprep.subr.bf16.mxu0 0
        %852 = vmatpush1.bf16.xpose.msra.mxu0 0
        %853 = vmatprep.subr.bf16.mxu0 0
        %854 = vmatpush1.bf16.xpose.msra.mxu0 0
        %855 = vmatprep.subr.bf16.mxu0 0
        %856 = vmatpush1.bf16.xpose.msra.mxu0 0
        %857 = vmatprep.mubr.bf16.mxu0 0
        %858 = vmatmul.mubr.bf16.gmra.mrb[0].mxu0 %v820
        %v859 = vpop.f32.mrb[0].mxu0
        %v860 = vadd.f32 0.0, %v859
        %v861 = vpop.f32.mrb[0].mxu0
        %v862 = vpop.f32.mrb[0].mxu0
        %v863 = vpop.f32.mrb[0].mxu0
        %864 = vdwg.mxu0
        %v865 = vsel %vm818, %v860, -inf
        %866 = vmax.xlane.f32.xlu0 %v865
        %v867 = vpop.xlane.xlu0 %866
        %v868 = vsub.f32 %v860, %v867
        %v869 = vmul.f32 %v868, 1.442695
        %v870 = vpow.pop %v869
        %v871 = vsel %vm818, %v870, 0.0
        %872 = vadd.xlane.f32.xlu0 %v871
        %v873 = vpop.xlane.xlu0 %872
        %v874 = vrcp.pop %v873
        %v875 = vmul.f32 %v870, %v874
        %v876 = vpack.c.bf16 %v875, %v875
        %877 = vrot.lane.b32.xlu0 %v814, 64
        %v878 = vpop.permute.xlu0 %877
        %v880 = vsel %vm818, %v876, 0
        %vm882 = vcmask 1043456
        %v884 = vsel %vm882, %v878, 0
        %886 = vmatprep.subr.bf16.mxu0 0
        %887 = vmatpush1.bf16.msra.mxu0 %v884
        %888 = vmatprep.subr.bf16.mxu0 0
        %889 = vmatpush1.bf16.msra.mxu0 0
        %890 = vmatprep.subr.bf16.mxu0 0
        %891 = vmatpush1.bf16.msra.mxu0 0
        %892 = vmatprep.subr.bf16.mxu0 0
        %893 = vmatpush1.bf16.msra.mxu0 0
        %894 = vmatprep.subr.bf16.mxu0 0
        %895 = vmatpush1.bf16.msra.mxu0 0
        %896 = vmatprep.subr.bf16.mxu0 0
        %897 = vmatpush1.bf16.msra.mxu0 0
        %898 = vmatprep.subr.bf16.mxu0 0
        %899 = vmatpush1.bf16.msra.mxu0 0
        %900 = vmatprep.subr.bf16.mxu0 0
        %901 = vmatpush1.bf16.msra.mxu0 0
        %902 = vmatprep.subr.bf16.mxu0 0
        %903 = vmatpush1.bf16.msra.mxu0 0
        %904 = vmatprep.subr.bf16.mxu0 0
        %905 = vmatpush1.bf16.msra.mxu0 0
        %906 = vmatprep.subr.bf16.mxu0 0
        %907 = vmatpush1.bf16.msra.mxu0 0
        %908 = vmatprep.subr.bf16.mxu0 0
        %909 = vmatpush1.bf16.msra.mxu0 0
        %910 = vmatprep.subr.bf16.mxu0 0
        %911 = vmatpush1.bf16.msra.mxu0 0
        %912 = vmatprep.subr.bf16.mxu0 0
        %913 = vmatpush1.bf16.msra.mxu0 0
        %914 = vmatprep.subr.bf16.mxu0 0
        %915 = vmatpush1.bf16.msra.mxu0 0
        %916 = vmatprep.subr.bf16.mxu0 0
        %917 = vmatpush1.bf16.msra.mxu0 0
        %918 = vmatprep.mubr.bf16.mxu0 0
        %919 = vmatmul.mubr.bf16.gmra.mrb[0].mxu0 %v880
        %v920 = vpop.f32.mrb[0].mxu0
        %v921 = vadd.f32 0.0, %v920
        %v922 = vpop.f32.mrb[0].mxu0
        %v923 = vpop.f32.mrb[0].mxu0
        %v924 = vpop.f32.mrb[0].mxu0
        %925 = vdwg.mxu0
        %v926 = vpack.c.bf16 %v921, %v921
        %927 = vrot.lane.b32.xlu0 %v814, 120
        %v928 = vpop.permute.xlu0 %927
        %929 = vrot.lane.b32.xlu0 %v814, 88
        %v930 = vpop.permute.xlu0 %929
        %v932 = vsel %vm818, %v928, 0
        %v935 = vsel %vm818, %v930, 0
        %937 = vmatprep.subr.bf16.mxu0 0
        %938 = vmatpush1.bf16.xpose.msra.mxu0 %v935
        %939 = vmatprep.subr.bf16.mxu0 0
        %940 = vmatpush1.bf16.xpose.msra.mxu0 0
        %941 = vmatprep.subr.bf16.mxu0 0
        %942 = vmatpush1.bf16.xpose.msra.mxu0 0
        %943 = vmatprep.subr.bf16.mxu0 0
        %944 = vmatpush1.bf16.xpose.msra.mxu0 0
        %945 = vmatprep.subr.bf16.mxu0 0
        %946 = vmatpush1.bf16.xpose.msra.mxu0 0
        %947 = vmatprep.subr.bf16.mxu0 0
        %948 = vmatpush1.bf16.xpose.msra.mxu0 0
        %949 = vmatprep.subr.bf16.mxu0 0
        %950 = vmatpush1.bf16.xpose.msra.mxu0 0
        %951 = vmatprep.subr.bf16.mxu0 0
        %952 = vmatpush1.bf16.xpose.msra.mxu0 0
        %953 = vmatprep.subr.bf16.mxu0 0
        %954 = vmatpush1.bf16.xpose.msra.mxu0 0
        %955 = vmatprep.subr.bf16.mxu0 0
        %956 = vmatpush1.bf16.xpose.msra.mxu0 0
        %957 = vmatprep.subr.bf16.mxu0 0
        %958 = vmatpush1.bf16.xpose.msra.mxu0 0
        %959 = vmatprep.subr.bf16.mxu0 0
        %960 = vmatpush1.bf16.xpose.msra.mxu0 0
        %961 = vmatprep.subr.bf16.mxu0 0
        %962 = vmatpush1.bf16.xpose.msra.mxu0 0
        %963 = vmatprep.subr.bf16.mxu0 0
        %964 = vmatpush1.bf16.xpose.msra.mxu0 0
        %965 = vmatprep.subr.bf16.mxu0 0
        %966 = vmatpush1.bf16.xpose.msra.mxu0 0
        %967 = vmatprep.subr.bf16.mxu0 0
        %968 = vmatpush1.bf16.xpose.msra.mxu0 0
        %969 = vmatprep.mubr.bf16.mxu0 0
        %970 = vmatmul.mubr.bf16.gmra.mrb[0].mxu0 %v932
        %v971 = vpop.f32.mrb[0].mxu0
        %v972 = vadd.f32 0.0, %v971
        %v973 = vpop.f32.mrb[0].mxu0
        %v974 = vpop.f32.mrb[0].mxu0
        %v975 = vpop.f32.mrb[0].mxu0
        %976 = vdwg.mxu0
        %v977 = vsel %vm818, %v972, -inf
        %978 = vmax.xlane.f32.xlu0 %v977
        %v979 = vpop.xlane.xlu0 %978
        %v980 = vsub.f32 %v972, %v979
        %v981 = vmul.f32 %v980, 1.442695
        %v982 = vpow.pop %v981
        %v983 = vsel %vm818, %v982, 0.0
        %984 = vadd.xlane.f32.xlu0 %v983
        %v985 = vpop.xlane.xlu0 %984
        %v986 = vrcp.pop %v985
        %v987 = vmul.f32 %v982, %v986
        %v988 = vpack.c.bf16 %v987, %v987
        %989 = vrot.lane.b32.xlu0 %v814, 56
        %v990 = vpop.permute.xlu0 %989
        %v992 = vsel %vm818, %v988, 0
        %v995 = vsel %vm882, %v990, 0
        %997 = vmatprep.subr.bf16.mxu0 0
        %998 = vmatpush1.bf16.msra.mxu0 %v995
        %999 = vmatprep.subr.bf16.mxu0 0
        %1000 = vmatpush1.bf16.msra.mxu0 0
        %1001 = vmatprep.subr.bf16.mxu0 0
        %1002 = vmatpush1.bf16.msra.mxu0 0
        %1003 = vmatprep.subr.bf16.mxu0 0
        %1004 = vmatpush1.bf16.msra.mxu0 0
        %1005 = vmatprep.subr.bf16.mxu0 0
        %1006 = vmatpush1.bf16.msra.mxu0 0
        %1007 = vmatprep.subr.bf16.mxu0 0
        %1008 = vmatpush1.bf16.msra.mxu0 0
        %1009 = vmatprep.subr.bf16.mxu0 0
        %1010 = vmatpush1.bf16.msra.mxu0 0
        %1011 = vmatprep.subr.bf16.mxu0 0
        %1012 = vmatpush1.bf16.msra.mxu0 0
        %1013 = vmatprep.subr.bf16.mxu0 0
        %1014 = vmatpush1.bf16.msra.mxu0 0
        %1015 = vmatprep.subr.bf16.mxu0 0
        %1016 = vmatpush1.bf16.msra.mxu0 0
        %1017 = vmatprep.subr.bf16.mxu0 0
        %1018 = vmatpush1.bf16.msra.mxu0 0
        %1019 = vmatprep.subr.bf16.mxu0 0
        %1020 = vmatpush1.bf16.msra.mxu0 0
        %1021 = vmatprep.subr.bf16.mxu0 0
        %1022 = vmatpush1.bf16.msra.mxu0 0
        %1023 = vmatprep.subr.bf16.mxu0 0
        %1024 = vmatpush1.bf16.msra.mxu0 0
        %1025 = vmatprep.subr.bf16.mxu0 0
        %1026 = vmatpush1.bf16.msra.mxu0 0
        %1027 = vmatprep.subr.bf16.mxu0 0
        %1028 = vmatpush1.bf16.msra.mxu0 0
        %1029 = vmatprep.mubr.bf16.mxu0 0
        %1030 = vmatmul.mubr.bf16.gmra.mrb[0].mxu0 %v992
        %v1031 = vpop.f32.mrb[0].mxu0
        %v1032 = vadd.f32 0.0, %v1031
        %v1033 = vpop.f32.mrb[0].mxu0
        %v1034 = vpop.f32.mrb[0].mxu0
        %v1035 = vpop.f32.mrb[0].mxu0
        %1036 = vdwg.mxu0
        %v1037 = vpack.c.bf16 %v1032, %v1032
        %1038 = vrot.lane.b32.xlu0 %v814, 112
        %v1039 = vpop.permute.xlu0 %1038
        %1040 = vrot.lane.b32.xlu0 %v814, 80
        %v1041 = vpop.permute.xlu0 %1040
        %v1043 = vsel %vm818, %v1039, 0
        %v1046 = vsel %vm818, %v1041, 0
        %1048 = vmatprep.subr.bf16.mxu0 0
        %1049 = vmatpush1.bf16.xpose.msra.mxu0 %v1046
        %1050 = vmatprep.subr.bf16.mxu0 0
        %1051 = vmatpush1.bf16.xpose.msra.mxu0 0
        %1052 = vmatprep.subr.bf16.mxu0 0
        %1053 = vmatpush1.bf16.xpose.msra.mxu0 0
        %1054 = vmatprep.subr.bf16.mxu0 0
        %1055 = vmatpush1.bf16.xpose.msra.mxu0 0
        %1056 = vmatprep.subr.bf16.mxu0 0
        %1057 = vmatpush1.bf16.xpose.msra.mxu0 0
        %1058 = vmatprep.subr.bf16.mxu0 0
        %1059 = vmatpush1.bf16.xpose.msra.mxu0 0
        %1060 = vmatprep.subr.bf16.mxu0 0
        %1061 = vmatpush1.bf16.xpose.msra.mxu0 0
        %1062 = vmatprep.subr.bf16.mxu0 0
        %1063 = vmatpush1.bf16.xpose.msra.mxu0 0
        %1064 = vmatprep.subr.bf16.mxu0 0
        %1065 = vmatpush1.bf16.xpose.msra.mxu0 0
        %1066 = vmatprep.subr.bf16.mxu0 0
        %1067 = vmatpush1.bf16.xpose.msra.mxu0 0
        %1068 = vmatprep.subr.bf16.mxu0 0
        %1069 = vmatpush1.bf16.xpose.msra.mxu0 0
        %1070 = vmatprep.subr.bf16.mxu0 0
        %1071 = vmatpush1.bf16.xpose.msra.mxu0 0
        %1072 = vmatprep.subr.bf16.mxu0 0
        %1073 = vmatpush1.bf16.xpose.msra.mxu0 0
        %1074 = vmatprep.subr.bf16.mxu0 0
        %1075 = vmatpush1.bf16.xpose.msra.mxu0 0
        %1076 = vmatprep.subr.bf16.mxu0 0
        %1077 = vmatpush1.bf16.xpose.msra.mxu0 0
        %1078 = vmatprep.subr.bf16.mxu0 0
        %1079 = vmatpush1.bf16.xpose.msra.mxu0 0
        %1080 = vmatprep.mubr.bf16.mxu0 0
        %1081 = vmatmul.mubr.bf16.gmra.mrb[0].mxu0 %v1043
        %v1082 = vpop.f32.mrb[0].mxu0
        %v1083 = vadd.f32 0.0, %v1082
        %v1084 = vpop.f32.mrb[0].mxu0
        %v1085 = vpop.f32.mrb[0].mxu0
        %v1086 = vpop.f32.mrb[0].mxu0
        %1087 = vdwg.mxu0
        %v1088 = vsel %vm818, %v1083, -inf
        %1089 = vmax.xlane.f32.xlu0 %v1088
        %v1090 = vpop.xlane.xlu0 %1089
        %v1091 = vsub.f32 %v1083, %v1090
        %v1092 = vmul.f32 %v1091, 1.442695
        %v1093 = vpow.pop %v1092
        %v1094 = vsel %vm818, %v1093, 0.0
        %1095 = vadd.xlane.f32.xlu0 %v1094
        %v1096 = vpop.xlane.xlu0 %1095
        %v1097 = vrcp.pop %v1096
        %v1098 = vmul.f32 %v1093, %v1097
        %v1099 = vpack.c.bf16 %v1098, %v1098
        %1100 = vrot.lane.b32.xlu0 %v814, 48
        %v1101 = vpop.permute.xlu0 %1100
        %v1103 = vsel %vm818, %v1099, 0
        %v1106 = vsel %vm882, %v1101, 0
        %1108 = vmatprep.subr.bf16.mxu0 0
        %1109 = vmatpush1.bf16.msra.mxu0 %v1106
        %1110 = vmatprep.subr.bf16.mxu0 0
        %1111 = vmatpush1.bf16.msra.mxu0 0
        %1112 = vmatprep.subr.bf16.mxu0 0
        %1113 = vmatpush1.bf16.msra.mxu0 0
        %1114 = vmatprep.subr.bf16.mxu0 0
        %1115 = vmatpush1.bf16.msra.mxu0 0
        %1116 = vmatprep.subr.bf16.mxu0 0
        %1117 = vmatpush1.bf16.msra.mxu0 0
        %1118 = vmatprep.subr.bf16.mxu0 0
        %1119 = vmatpush1.bf16.msra.mxu0 0
        %1120 = vmatprep.subr.bf16.mxu0 0
        %1121 = vmatpush1.bf16.msra.mxu0 0
        %1122 = vmatprep.subr.bf16.mxu0 0
        %1123 = vmatpush1.bf16.msra.mxu0 0
        %1124 = vmatprep.subr.bf16.mxu0 0
        %1125 = vmatpush1.bf16.msra.mxu0 0
        %1126 = vmatprep.subr.bf16.mxu0 0
        %1127 = vmatpush1.bf16.msra.mxu0 0
        %1128 = vmatprep.subr.bf16.mxu0 0
        %1129 = vmatpush1.bf16.msra.mxu0 0
        %1130 = vmatprep.subr.bf16.mxu0 0
        %1131 = vmatpush1.bf16.msra.mxu0 0
        %1132 = vmatprep.subr.bf16.mxu0 0
        %1133 = vmatpush1.bf16.msra.mxu0 0
        %1134 = vmatprep.subr.bf16.mxu0 0
        %1135 = vmatpush1.bf16.msra.mxu0 0
        %1136 = vmatprep.subr.bf16.mxu0 0
        %1137 = vmatpush1.bf16.msra.mxu0 0
        %1138 = vmatprep.subr.bf16.mxu0 0
        %1139 = vmatpush1.bf16.msra.mxu0 0
        %1140 = vmatprep.mubr.bf16.mxu0 0
        %1141 = vmatmul.mubr.bf16.gmra.mrb[0].mxu0 %v1103
        %v1142 = vpop.f32.mrb[0].mxu0
        %v1143 = vadd.f32 0.0, %v1142
        %v1144 = vpop.f32.mrb[0].mxu0
        %v1145 = vpop.f32.mrb[0].mxu0
        %v1146 = vpop.f32.mrb[0].mxu0
        %1147 = vdwg.mxu0
        %v1148 = vpack.c.bf16 %v1143, %v1143
        %1149 = vrot.lane.b32.xlu0 %v814, 104
        %v1150 = vpop.permute.xlu0 %1149
        %1151 = vrot.lane.b32.xlu0 %v814, 72
        %v1152 = vpop.permute.xlu0 %1151
        %v1154 = vsel %vm818, %v1150, 0
        %v1157 = vsel %vm818, %v1152, 0
        %1159 = vmatprep.subr.bf16.mxu0 0
        %1160 = vmatpush1.bf16.xpose.msra.mxu0 %v1157
        %1161 = vmatprep.subr.bf16.mxu0 0
        %1162 = vmatpush1.bf16.xpose.msra.mxu0 0
        %1163 = vmatprep.subr.bf16.mxu0 0
        %1164 = vmatpush1.bf16.xpose.msra.mxu0 0
        %1165 = vmatprep.subr.bf16.mxu0 0
        %1166 = vmatpush1.bf16.xpose.msra.mxu0 0
        %1167 = vmatprep.subr.bf16.mxu0 0
        %1168 = vmatpush1.bf16.xpose.msra.mxu0 0
        %1169 = vmatprep.subr.bf16.mxu0 0
        %1170 = vmatpush1.bf16.xpose.msra.mxu0 0
        %1171 = vmatprep.subr.bf16.mxu0 0
        %1172 = vmatpush1.bf16.xpose.msra.mxu0 0
        %1173 = vmatprep.subr.bf16.mxu0 0
        %1174 = vmatpush1.bf16.xpose.msra.mxu0 0
        %1175 = vmatprep.subr.bf16.mxu0 0
        %1176 = vmatpush1.bf16.xpose.msra.mxu0 0
        %1177 = vmatprep.subr.bf16.mxu0 0
        %1178 = vmatpush1.bf16.xpose.msra.mxu0 0
        %1179 = vmatprep.subr.bf16.mxu0 0
        %1180 = vmatpush1.bf16.xpose.msra.mxu0 0
        %1181 = vmatprep.subr.bf16.mxu0 0
        %1182 = vmatpush1.bf16.xpose.msra.mxu0 0
        %1183 = vmatprep.subr.bf16.mxu0 0
        %1184 = vmatpush1.bf16.xpose.msra.mxu0 0
        %1185 = vmatprep.subr.bf16.mxu0 0
        %1186 = vmatpush1.bf16.xpose.msra.mxu0 0
        %1187 = vmatprep.subr.bf16.mxu0 0
        %1188 = vmatpush1.bf16.xpose.msra.mxu0 0
        %1189 = vmatprep.subr.bf16.mxu0 0
        %1190 = vmatpush1.bf16.xpose.msra.mxu0 0
        %1191 = vmatprep.mubr.bf16.mxu0 0
        %1192 = vmatmul.mubr.bf16.gmra.mrb[0].mxu0 %v1154
        %v1193 = vpop.f32.mrb[0].mxu0
        %v1194 = vadd.f32 0.0, %v1193
        %v1195 = vpop.f32.mrb[0].mxu0
        %v1196 = vpop.f32.mrb[0].mxu0
        %v1197 = vpop.f32.mrb[0].mxu0
        %1198 = vdwg.mxu0
        %v1199 = vsel %vm818, %v1194, -inf
        %1200 = vmax.xlane.f32.xlu0 %v1199
        %v1201 = vpop.xlane.xlu0 %1200
        %v1202 = vsub.f32 %v1194, %v1201
        %v1203 = vmul.f32 %v1202, 1.442695
        %v1204 = vpow.pop %v1203
        %v1205 = vsel %vm818, %v1204, 0.0
        %1206 = vadd.xlane.f32.xlu0 %v1205
        %v1207 = vpop.xlane.xlu0 %1206
        %v1208 = vrcp.pop %v1207
        %v1209 = vmul.f32 %v1204, %v1208
        %v1210 = vpack.c.bf16 %v1209, %v1209
        %1211 = vrot.lane.b32.xlu0 %v814, 40
        %v1212 = vpop.permute.xlu0 %1211
        %v1214 = vsel %vm818, %v1210, 0
        %v1217 = vsel %vm882, %v1212, 0
        %1219 = vmatprep.subr.bf16.mxu0 0
        %1220 = vmatpush1.bf16.msra.mxu0 %v1217
        %1221 = vmatprep.subr.bf16.mxu0 0
        %1222 = vmatpush1.bf16.msra.mxu0 0
        %1223 = vmatprep.subr.bf16.mxu0 0
        %1224 = vmatpush1.bf16.msra.mxu0 0
        %1225 = vmatprep.subr.bf16.mxu0 0
        %1226 = vmatpush1.bf16.msra.mxu0 0
        %1227 = vmatprep.subr.bf16.mxu0 0
        %1228 = vmatpush1.bf16.msra.mxu0 0
        %1229 = vmatprep.subr.bf16.mxu0 0
        %1230 = vmatpush1.bf16.msra.mxu0 0
        %1231 = vmatprep.subr.bf16.mxu0 0
        %1232 = vmatpush1.bf16.msra.mxu0 0
        %1233 = vmatprep.subr.bf16.mxu0 0
        %1234 = vmatpush1.bf16.msra.mxu0 0
        %1235 = vmatprep.subr.bf16.mxu0 0
        %1236 = vmatpush1.bf16.msra.mxu0 0
        %1237 = vmatprep.subr.bf16.mxu0 0
        %1238 = vmatpush1.bf16.msra.mxu0 0
        %1239 = vmatprep.subr.bf16.mxu0 0
        %1240 = vmatpush1.bf16.msra.mxu0 0
        %1241 = vmatprep.subr.bf16.mxu0 0
        %1242 = vmatpush1.bf16.msra.mxu0 0
        %1243 = vmatprep.subr.bf16.mxu0 0
        %1244 = vmatpush1.bf16.msra.mxu0 0
        %1245 = vmatprep.subr.bf16.mxu0 0
        %1246 = vmatpush1.bf16.msra.mxu0 0
        %1247 = vmatprep.subr.bf16.mxu0 0
        %1248 = vmatpush1.bf16.msra.mxu0 0
        %1249 = vmatprep.subr.bf16.mxu0 0
        %1250 = vmatpush1.bf16.msra.mxu0 0
        %1251 = vmatprep.mubr.bf16.mxu0 0
        %1252 = vmatmul.mubr.bf16.gmra.mrb[0].mxu0 %v1214
        %v1253 = vpop.f32.mrb[0].mxu0
        %v1254 = vadd.f32 0.0, %v1253
        %v1255 = vpop.f32.mrb[0].mxu0
        %v1256 = vpop.f32.mrb[0].mxu0
        %v1257 = vpop.f32.mrb[0].mxu0
        %1258 = vdwg.mxu0
        %v1259 = vpack.c.bf16 %v1254, %v1254
        %1261 = vrot.lane.b32.xlu0 %v1037, 8
        %v1262 = vpop.permute.xlu0 %1261
        %1264 = vrot.lane.b32.xlu0 %v1148, 16
        %v1265 = vpop.permute.xlu0 %1264
        %1267 = vrot.lane.b32.xlu0 %v1259, 24
        %v1268 = vpop.permute.xlu0 %1267
        %v1271 = vsel %vm818, %v926, %v1262
        %vm1272 = vcmask 130048
        %v1274 = vsel %vm1272, %v1271, %v1265
        %vm1275 = vcmask 195584
        %v1277 = vsel %vm1275, %v1274, %v1268
        %vm1279 = vcmask 257024
        %1280 = vst.msk [vmem:[#allocation4] sm:$0xf] %vm1279, %v1277
        %v1281 = vld [vmem:[#allocation3] sm:$0xf0]
        %v1283 = vrot.slane %v1281, 4
        %1284 = vrot.lane.b32.xlu0 %v1283, 96
        %v1285 = vpop.permute.xlu0 %1284
        %v1287 = vsel %vm818, %v1283, 0
        %v1290 = vsel %vm818, %v1285, 0
        %1292 = vmatprep.subr.bf16.mxu0 0
        %1293 = vmatpush1.bf16.xpose.msra.mxu0 %v1290
        %1294 = vmatprep.subr.bf16.mxu0 0
        %1295 = vmatpush1.bf16.xpose.msra.mxu0 0
        %1296 = vmatprep.subr.bf16.mxu0 0
        %1297 = vmatpush1.bf16.xpose.msra.mxu0 0
        %1298 = vmatprep.subr.bf16.mxu0 0
        %1299 = vmatpush1.bf16.xpose.msra.mxu0 0
        %1300 = vmatprep.subr.bf16.mxu0 0
        %1301 = vmatpush1.bf16.xpose.msra.mxu0 0
        %1302 = vmatprep.subr.bf16.mxu0 0
        %1303 = vmatpush1.bf16.xpose.msra.mxu0 0
        %1304 = vmatprep.subr.bf16.mxu0 0
        %1305 = vmatpush1.bf16.xpose.msra.mxu0 0
        %1306 = vmatprep.subr.bf16.mxu0 0
        %1307 = vmatpush1.bf16.xpose.msra.mxu0 0
        %1308 = vmatprep.subr.bf16.mxu0 0
        %1309 = vmatpush1.bf16.xpose.msra.mxu0 0
        %1310 = vmatprep.subr.bf16.mxu0 0
        %1311 = vmatpush1.bf16.xpose.msra.mxu0 0
        %1312 = vmatprep.subr.bf16.mxu0 0
        %1313 = vmatpush1.bf16.xpose.msra.mxu0 0
        %1314 = vmatprep.subr.bf16.mxu0 0
        %1315 = vmatpush1.bf16.xpose.msra.mxu0 0
        %1316 = vmatprep.subr.bf16.mxu0 0
        %1317 = vmatpush1.bf16.xpose.msra.mxu0 0
        %1318 = vmatprep.subr.bf16.mxu0 0
        %1319 = vmatpush1.bf16.xpose.msra.mxu0 0
        %1320 = vmatprep.subr.bf16.mxu0 0
        %1321 = vmatpush1.bf16.xpose.msra.mxu0 0
        %1322 = vmatprep.subr.bf16.mxu0 0
        %1323 = vmatpush1.bf16.xpose.msra.mxu0 0
        %1324 = vmatprep.mubr.bf16.mxu0 0
        %1325 = vmatmul.mubr.bf16.gmra.mrb[0].mxu0 %v1287
        %v1326 = vpop.f32.mrb[0].mxu0
        %v1327 = vadd.f32 0.0, %v1326
        %v1328 = vpop.f32.mrb[0].mxu0
        %v1329 = vpop.f32.mrb[0].mxu0
        %v1330 = vpop.f32.mrb[0].mxu0
        %1331 = vdwg.mxu0
        %v1332 = vsel %vm818, %v1327, -inf
        %1333 = vmax.xlane.f32.xlu0 %v1332
        %v1334 = vpop.xlane.xlu0 %1333
        %v1335 = vsub.f32 %v1327, %v1334
        %v1336 = vmul.f32 %v1335, 1.442695
        %v1337 = vpow.pop %v1336
        %v1338 = vsel %vm818, %v1337, 0.0
        %1339 = vadd.xlane.f32.xlu0 %v1338
        %v1340 = vpop.xlane.xlu0 %1339
        %v1341 = vrcp.pop %v1340
        %v1342 = vmul.f32 %v1337, %v1341
        %v1343 = vpack.c.bf16 %v1342, %v1342
        %1344 = vrot.lane.b32.xlu0 %v1283, 64
        %v1345 = vpop.permute.xlu0 %1344
        %v1347 = vsel %vm818, %v1343, 0
        %v1350 = vsel %vm882, %v1345, 0
        %1352 = vmatprep.subr.bf16.mxu0 0
        %1353 = vmatpush1.bf16.msra.mxu0 %v1350
        %1354 = vmatprep.subr.bf16.mxu0 0
        %1355 = vmatpush1.bf16.msra.mxu0 0
        %1356 = vmatprep.subr.bf16.mxu0 0
        %1357 = vmatpush1.bf16.msra.mxu0 0
        %1358 = vmatprep.subr.bf16.mxu0 0
        %1359 = vmatpush1.bf16.msra.mxu0 0
        %1360 = vmatprep.subr.bf16.mxu0 0
        %1361 = vmatpush1.bf16.msra.mxu0 0
        %1362 = vmatprep.subr.bf16.mxu0 0
        %1363 = vmatpush1.bf16.msra.mxu0 0
        %1364 = vmatprep.subr.bf16.mxu0 0
        %1365 = vmatpush1.bf16.msra.mxu0 0
        %1366 = vmatprep.subr.bf16.mxu0 0
        %1367 = vmatpush1.bf16.msra.mxu0 0
        %1368 = vmatprep.subr.bf16.mxu0 0
        %1369 = vmatpush1.bf16.msra.mxu0 0
        %1370 = vmatprep.subr.bf16.mxu0 0
        %1371 = vmatpush1.bf16.msra.mxu0 0
        %1372 = vmatprep.subr.bf16.mxu0 0
        %1373 = vmatpush1.bf16.msra.mxu0 0
        %1374 = vmatprep.subr.bf16.mxu0 0
        %1375 = vmatpush1.bf16.msra.mxu0 0
        %1376 = vmatprep.subr.bf16.mxu0 0
        %1377 = vmatpush1.bf16.msra.mxu0 0
        %1378 = vmatprep.subr.bf16.mxu0 0
        %1379 = vmatpush1.bf16.msra.mxu0 0
        %1380 = vmatprep.subr.bf16.mxu0 0
        %1381 = vmatpush1.bf16.msra.mxu0 0
        %1382 = vmatprep.subr.bf16.mxu0 0
        %1383 = vmatpush1.bf16.msra.mxu0 0
        %1384 = vmatprep.mubr.bf16.mxu0 0
        %1385 = vmatmul.mubr.bf16.gmra.mrb[0].mxu0 %v1347
        %v1386 = vpop.f32.mrb[0].mxu0
        %v1387 = vadd.f32 0.0, %v1386
        %v1388 = vpop.f32.mrb[0].mxu0
        %v1389 = vpop.f32.mrb[0].mxu0
        %v1390 = vpop.f32.mrb[0].mxu0
        %1391 = vdwg.mxu0
        %v1392 = vpack.c.bf16 %v1387, %v1387
        %1393 = vrot.lane.b32.xlu0 %v1283, 120
        %v1394 = vpop.permute.xlu0 %1393
        %1395 = vrot.lane.b32.xlu0 %v1283, 88
        %v1396 = vpop.permute.xlu0 %1395
        %v1398 = vsel %vm818, %v1394, 0
        %v1401 = vsel %vm818, %v1396, 0
        %1403 = vmatprep.subr.bf16.mxu0 0
        %1404 = vmatpush1.bf16.xpose.msra.mxu0 %v1401
        %1405 = vmatprep.subr.bf16.mxu0 0
        %1406 = vmatpush1.bf16.xpose.msra.mxu0 0
        %1407 = vmatprep.subr.bf16.mxu0 0
        %1408 = vmatpush1.bf16.xpose.msra.mxu0 0
        %1409 = vmatprep.subr.bf16.mxu0 0
        %1410 = vmatpush1.bf16.xpose.msra.mxu0 0
        %1411 = vmatprep.subr.bf16.mxu0 0
        %1412 = vmatpush1.bf16.xpose.msra.mxu0 0
        %1413 = vmatprep.subr.bf16.mxu0 0
        %1414 = vmatpush1.bf16.xpose.msra.mxu0 0
        %1415 = vmatprep.subr.bf16.mxu0 0
        %1416 = vmatpush1.bf16.xpose.msra.mxu0 0
        %1417 = vmatprep.subr.bf16.mxu0 0
        %1418 = vmatpush1.bf16.xpose.msra.mxu0 0
        %1419 = vmatprep.subr.bf16.mxu0 0
        %1420 = vmatpush1.bf16.xpose.msra.mxu0 0
        %1421 = vmatprep.subr.bf16.mxu0 0
        %1422 = vmatpush1.bf16.xpose.msra.mxu0 0
        %1423 = vmatprep.subr.bf16.mxu0 0
        %1424 = vmatpush1.bf16.xpose.msra.mxu0 0
        %1425 = vmatprep.subr.bf16.mxu0 0
        %1426 = vmatpush1.bf16.xpose.msra.mxu0 0
        %1427 = vmatprep.subr.bf16.mxu0 0
        %1428 = vmatpush1.bf16.xpose.msra.mxu0 0
        %1429 = vmatprep.subr.bf16.mxu0 0
        %1430 = vmatpush1.bf16.xpose.msra.mxu0 0
        %1431 = vmatprep.subr.bf16.mxu0 0
        %1432 = vmatpush1.bf16.xpose.msra.mxu0 0
        %1433 = vmatprep.subr.bf16.mxu0 0
        %1434 = vmatpush1.bf16.xpose.msra.mxu0 0
        %1435 = vmatprep.mubr.bf16.mxu0 0
        %1436 = vmatmul.mubr.bf16.gmra.mrb[0].mxu0 %v1398
        %v1437 = vpop.f32.mrb[0].mxu0
        %v1438 = vadd.f32 0.0, %v1437
        %v1439 = vpop.f32.mrb[0].mxu0
        %v1440 = vpop.f32.mrb[0].mxu0
        %v1441 = vpop.f32.mrb[0].mxu0
        %1442 = vdwg.mxu0
        %v1443 = vsel %vm818, %v1438, -inf
        %1444 = vmax.xlane.f32.xlu0 %v1443
        %v1445 = vpop.xlane.xlu0 %1444
        %v1446 = vsub.f32 %v1438, %v1445
        %v1447 = vmul.f32 %v1446, 1.442695
        %v1448 = vpow.pop %v1447
        %v1449 = vsel %vm818, %v1448, 0.0
        %1450 = vadd.xlane.f32.xlu0 %v1449
        %v1451 = vpop.xlane.xlu0 %1450
        %v1452 = vrcp.pop %v1451
        %v1453 = vmul.f32 %v1448, %v1452
        %v1454 = vpack.c.bf16 %v1453, %v1453
        %1455 = vrot.lane.b32.xlu0 %v1283, 56
        %v1456 = vpop.permute.xlu0 %1455
        %v1458 = vsel %vm818, %v1454, 0
        %v1461 = vsel %vm882, %v1456, 0
        %1463 = vmatprep.subr.bf16.mxu0 0
        %1464 = vmatpush1.bf16.msra.mxu0 %v1461
        %1465 = vmatprep.subr.bf16.mxu0 0
        %1466 = vmatpush1.bf16.msra.mxu0 0
        %1467 = vmatprep.subr.bf16.mxu0 0
        %1468 = vmatpush1.bf16.msra.mxu0 0
        %1469 = vmatprep.subr.bf16.mxu0 0
        %1470 = vmatpush1.bf16.msra.mxu0 0
        %1471 = vmatprep.subr.bf16.mxu0 0
        %1472 = vmatpush1.bf16.msra.mxu0 0
        %1473 = vmatprep.subr.bf16.mxu0 0
        %1474 = vmatpush1.bf16.msra.mxu0 0
        %1475 = vmatprep.subr.bf16.mxu0 0
        %1476 = vmatpush1.bf16.msra.mxu0 0
        %1477 = vmatprep.subr.bf16.mxu0 0
        %1478 = vmatpush1.bf16.msra.mxu0 0
        %1479 = vmatprep.subr.bf16.mxu0 0
        %1480 = vmatpush1.bf16.msra.mxu0 0
        %1481 = vmatprep.subr.bf16.mxu0 0
        %1482 = vmatpush1.bf16.msra.mxu0 0
        %1483 = vmatprep.subr.bf16.mxu0 0
        %1484 = vmatpush1.bf16.msra.mxu0 0
        %1485 = vmatprep.subr.bf16.mxu0 0
        %1486 = vmatpush1.bf16.msra.mxu0 0
        %1487 = vmatprep.subr.bf16.mxu0 0
        %1488 = vmatpush1.bf16.msra.mxu0 0
        %1489 = vmatprep.subr.bf16.mxu0 0
        %1490 = vmatpush1.bf16.msra.mxu0 0
        %1491 = vmatprep.subr.bf16.mxu0 0
        %1492 = vmatpush1.bf16.msra.mxu0 0
        %1493 = vmatprep.subr.bf16.mxu0 0
        %1494 = vmatpush1.bf16.msra.mxu0 0
        %1495 = vmatprep.mubr.bf16.mxu0 0
        %1496 = vmatmul.mubr.bf16.gmra.mrb[0].mxu0 %v1458
        %v1497 = vpop.f32.mrb[0].mxu0
        %v1498 = vadd.f32 0.0, %v1497
        %v1499 = vpop.f32.mrb[0].mxu0
        %v1500 = vpop.f32.mrb[0].mxu0
        %v1501 = vpop.f32.mrb[0].mxu0
        %1502 = vdwg.mxu0
        %v1503 = vpack.c.bf16 %v1498, %v1498
        %1504 = vrot.lane.b32.xlu0 %v1283, 112
        %v1505 = vpop.permute.xlu0 %1504
        %1506 = vrot.lane.b32.xlu0 %v1283, 80
        %v1507 = vpop.permute.xlu0 %1506
        %v1509 = vsel %vm818, %v1505, 0
        %v1512 = vsel %vm818, %v1507, 0
        %1514 = vmatprep.subr.bf16.mxu0 0
        %1515 = vmatpush1.bf16.xpose.msra.mxu0 %v1512
        %1516 = vmatprep.subr.bf16.mxu0 0
        %1517 = vmatpush1.bf16.xpose.msra.mxu0 0
        %1518 = vmatprep.subr.bf16.mxu0 0
        %1519 = vmatpush1.bf16.xpose.msra.mxu0 0
        %1520 = vmatprep.subr.bf16.mxu0 0
        %1521 = vmatpush1.bf16.xpose.msra.mxu0 0
        %1522 = vmatprep.subr.bf16.mxu0 0
        %1523 = vmatpush1.bf16.xpose.msra.mxu0 0
        %1524 = vmatprep.subr.bf16.mxu0 0
        %1525 = vmatpush1.bf16.xpose.msra.mxu0 0
        %1526 = vmatprep.subr.bf16.mxu0 0
        %1527 = vmatpush1.bf16.xpose.msra.mxu0 0
        %1528 = vmatprep.subr.bf16.mxu0 0
        %1529 = vmatpush1.bf16.xpose.msra.mxu0 0
        %1530 = vmatprep.subr.bf16.mxu0 0
        %1531 = vmatpush1.bf16.xpose.msra.mxu0 0
        %1532 = vmatprep.subr.bf16.mxu0 0
        %1533 = vmatpush1.bf16.xpose.msra.mxu0 0
        %1534 = vmatprep.subr.bf16.mxu0 0
        %1535 = vmatpush1.bf16.xpose.msra.mxu0 0
        %1536 = vmatprep.subr.bf16.mxu0 0
        %1537 = vmatpush1.bf16.xpose.msra.mxu0 0
        %1538 = vmatprep.subr.bf16.mxu0 0
        %1539 = vmatpush1.bf16.xpose.msra.mxu0 0
        %1540 = vmatprep.subr.bf16.mxu0 0
        %1541 = vmatpush1.bf16.xpose.msra.mxu0 0
        %1542 = vmatprep.subr.bf16.mxu0 0
        %1543 = vmatpush1.bf16.xpose.msra.mxu0 0
        %1544 = vmatprep.subr.bf16.mxu0 0
        %1545 = vmatpush1.bf16.xpose.msra.mxu0 0
        %1546 = vmatprep.mubr.bf16.mxu0 0
        %1547 = vmatmul.mubr.bf16.gmra.mrb[0].mxu0 %v1509
        %v1548 = vpop.f32.mrb[0].mxu0
        %v1549 = vadd.f32 0.0, %v1548
        %v1550 = vpop.f32.mrb[0].mxu0
        %v1551 = vpop.f32.mrb[0].mxu0
        %v1552 = vpop.f32.mrb[0].mxu0
        %1553 = vdwg.mxu0
        %v1554 = vsel %vm818, %v1549, -inf
        %1555 = vmax.xlane.f32.xlu0 %v1554
        %v1556 = vpop.xlane.xlu0 %1555
        %v1557 = vsub.f32 %v1549, %v1556
        %v1558 = vmul.f32 %v1557, 1.442695
        %v1559 = vpow.pop %v1558
        %v1560 = vsel %vm818, %v1559, 0.0
        %1561 = vadd.xlane.f32.xlu0 %v1560
        %v1562 = vpop.xlane.xlu0 %1561
        %v1563 = vrcp.pop %v1562
        %v1564 = vmul.f32 %v1559, %v1563
        %v1565 = vpack.c.bf16 %v1564, %v1564
        %1566 = vrot.lane.b32.xlu0 %v1283, 48
        %v1567 = vpop.permute.xlu0 %1566
        %v1569 = vsel %vm818, %v1565, 0
        %v1572 = vsel %vm882, %v1567, 0
        %1574 = vmatprep.subr.bf16.mxu0 0
        %1575 = vmatpush1.bf16.msra.mxu0 %v1572
        %1576 = vmatprep.subr.bf16.mxu0 0
        %1577 = vmatpush1.bf16.msra.mxu0 0
        %1578 = vmatprep.subr.bf16.mxu0 0
        %1579 = vmatpush1.bf16.msra.mxu0 0
        %1580 = vmatprep.subr.bf16.mxu0 0
        %1581 = vmatpush1.bf16.msra.mxu0 0
        %1582 = vmatprep.subr.bf16.mxu0 0
        %1583 = vmatpush1.bf16.msra.mxu0 0
        %1584 = vmatprep.subr.bf16.mxu0 0
        %1585 = vmatpush1.bf16.msra.mxu0 0
        %1586 = vmatprep.subr.bf16.mxu0 0
        %1587 = vmatpush1.bf16.msra.mxu0 0
        %1588 = vmatprep.subr.bf16.mxu0 0
        %1589 = vmatpush1.bf16.msra.mxu0 0
        %1590 = vmatprep.subr.bf16.mxu0 0
        %1591 = vmatpush1.bf16.msra.mxu0 0
        %1592 = vmatprep.subr.bf16.mxu0 0
        %1593 = vmatpush1.bf16.msra.mxu0 0
        %1594 = vmatprep.subr.bf16.mxu0 0
        %1595 = vmatpush1.bf16.msra.mxu0 0
        %1596 = vmatprep.subr.bf16.mxu0 0
        %1597 = vmatpush1.bf16.msra.mxu0 0
        %1598 = vmatprep.subr.bf16.mxu0 0
        %1599 = vmatpush1.bf16.msra.mxu0 0
        %1600 = vmatprep.subr.bf16.mxu0 0
        %1601 = vmatpush1.bf16.msra.mxu0 0
        %1602 = vmatprep.subr.bf16.mxu0 0
        %1603 = vmatpush1.bf16.msra.mxu0 0
        %1604 = vmatprep.subr.bf16.mxu0 0
        %1605 = vmatpush1.bf16.msra.mxu0 0
        %1606 = vmatprep.mubr.bf16.mxu0 0
        %1607 = vmatmul.mubr.bf16.gmra.mrb[0].mxu0 %v1569
        %v1608 = vpop.f32.mrb[0].mxu0
        %v1609 = vadd.f32 0.0, %v1608
        %v1610 = vpop.f32.mrb[0].mxu0
        %v1611 = vpop.f32.mrb[0].mxu0
        %v1612 = vpop.f32.mrb[0].mxu0
        %1613 = vdwg.mxu0
        %v1614 = vpack.c.bf16 %v1609, %v1609
        %1615 = vrot.lane.b32.xlu0 %v1283, 104
        %v1616 = vpop.permute.xlu0 %1615
        %1617 = vrot.lane.b32.xlu0 %v1283, 72
        %v1618 = vpop.permute.xlu0 %1617
        %v1620 = vsel %vm818, %v1616, 0
        %v1623 = vsel %vm818, %v1618, 0
        %1625 = vmatprep.subr.bf16.mxu0 0
        %1626 = vmatpush1.bf16.xpose.msra.mxu0 %v1623
        %1627 = vmatprep.subr.bf16.mxu0 0
        %1628 = vmatpush1.bf16.xpose.msra.mxu0 0
        %1629 = vmatprep.subr.bf16.mxu0 0
        %1630 = vmatpush1.bf16.xpose.msra.mxu0 0
        %1631 = vmatprep.subr.bf16.mxu0 0
        %1632 = vmatpush1.bf16.xpose.msra.mxu0 0
        %1633 = vmatprep.subr.bf16.mxu0 0
        %1634 = vmatpush1.bf16.xpose.msra.mxu0 0
        %1635 = vmatprep.subr.bf16.mxu0 0
        %1636 = vmatpush1.bf16.xpose.msra.mxu0 0
        %1637 = vmatprep.subr.bf16.mxu0 0
        %1638 = vmatpush1.bf16.xpose.msra.mxu0 0
        %1639 = vmatprep.subr.bf16.mxu0 0
        %1640 = vmatpush1.bf16.xpose.msra.mxu0 0
        %1641 = vmatprep.subr.bf16.mxu0 0
        %1642 = vmatpush1.bf16.xpose.msra.mxu0 0
        %1643 = vmatprep.subr.bf16.mxu0 0
        %1644 = vmatpush1.bf16.xpose.msra.mxu0 0
        %1645 = vmatprep.subr.bf16.mxu0 0
        %1646 = vmatpush1.bf16.xpose.msra.mxu0 0
        %1647 = vmatprep.subr.bf16.mxu0 0
        %1648 = vmatpush1.bf16.xpose.msra.mxu0 0
        %1649 = vmatprep.subr.bf16.mxu0 0
        %1650 = vmatpush1.bf16.xpose.msra.mxu0 0
        %1651 = vmatprep.subr.bf16.mxu0 0
        %1652 = vmatpush1.bf16.xpose.msra.mxu0 0
        %1653 = vmatprep.subr.bf16.mxu0 0
        %1654 = vmatpush1.bf16.xpose.msra.mxu0 0
        %1655 = vmatprep.subr.bf16.mxu0 0
        %1656 = vmatpush1.bf16.xpose.msra.mxu0 0
        %1657 = vmatprep.mubr.bf16.mxu0 0
        %1658 = vmatmul.mubr.bf16.gmra.mrb[0].mxu0 %v1620
        %v1659 = vpop.f32.mrb[0].mxu0
        %v1660 = vadd.f32 0.0, %v1659
        %v1661 = vpop.f32.mrb[0].mxu0
        %v1662 = vpop.f32.mrb[0].mxu0
        %v1663 = vpop.f32.mrb[0].mxu0
        %1664 = vdwg.mxu0
        %v1665 = vsel %vm818, %v1660, -inf
        %1666 = vmax.xlane.f32.xlu0 %v1665
        %v1667 = vpop.xlane.xlu0 %1666
        %v1668 = vsub.f32 %v1660, %v1667
        %v1669 = vmul.f32 %v1668, 1.442695
        %v1670 = vpow.pop %v1669
        %v1671 = vsel %vm818, %v1670, 0.0
        %1672 = vadd.xlane.f32.xlu0 %v1671
        %v1673 = vpop.xlane.xlu0 %1672
        %v1674 = vrcp.pop %v1673
        %v1675 = vmul.f32 %v1670, %v1674
        %v1676 = vpack.c.bf16 %v1675, %v1675
        %1677 = vrot.lane.b32.xlu0 %v1283, 40
        %v1678 = vpop.permute.xlu0 %1677
        %v1680 = vsel %vm818, %v1676, 0
        %v1683 = vsel %vm882, %v1678, 0
        %1685 = vmatprep.subr.bf16.mxu0 0
        %1686 = vmatpush1.bf16.msra.mxu0 %v1683
        %1687 = vmatprep.subr.bf16.mxu0 0
        %1688 = vmatpush1.bf16.msra.mxu0 0
        %1689 = vmatprep.subr.bf16.mxu0 0
        %1690 = vmatpush1.bf16.msra.mxu0 0
        %1691 = vmatprep.subr.bf16.mxu0 0
        %1692 = vmatpush1.bf16.msra.mxu0 0
        %1693 = vmatprep.subr.bf16.mxu0 0
        %1694 = vmatpush1.bf16.msra.mxu0 0
        %1695 = vmatprep.subr.bf16.mxu0 0
        %1696 = vmatpush1.bf16.msra.mxu0 0
        %1697 = vmatprep.subr.bf16.mxu0 0
        %1698 = vmatpush1.bf16.msra.mxu0 0
        %1699 = vmatprep.subr.bf16.mxu0 0
        %1700 = vmatpush1.bf16.msra.mxu0 0
        %1701 = vmatprep.subr.bf16.mxu0 0
        %1702 = vmatpush1.bf16.msra.mxu0 0
        %1703 = vmatprep.subr.bf16.mxu0 0
        %1704 = vmatpush1.bf16.msra.mxu0 0
        %1705 = vmatprep.subr.bf16.mxu0 0
        %1706 = vmatpush1.bf16.msra.mxu0 0
        %1707 = vmatprep.subr.bf16.mxu0 0
        %1708 = vmatpush1.bf16.msra.mxu0 0
        %1709 = vmatprep.subr.bf16.mxu0 0
        %1710 = vmatpush1.bf16.msra.mxu0 0
        %1711 = vmatprep.subr.bf16.mxu0 0
        %1712 = vmatpush1.bf16.msra.mxu0 0
        %1713 = vmatprep.subr.bf16.mxu0 0
        %1714 = vmatpush1.bf16.msra.mxu0 0
        %1715 = vmatprep.subr.bf16.mxu0 0
        %1716 = vmatpush1.bf16.msra.mxu0 0
        %1717 = vmatprep.mubr.bf16.mxu0 0
        %1718 = vmatmul.mubr.bf16.gmra.mrb[0].mxu0 %v1680
        %v1719 = vpop.f32.mrb[0].mxu0
        %v1720 = vadd.f32 0.0, %v1719
        %v1721 = vpop.f32.mrb[0].mxu0
        %v1722 = vpop.f32.mrb[0].mxu0
        %v1723 = vpop.f32.mrb[0].mxu0
        %1724 = vdwg.mxu0
        %v1725 = vpack.c.bf16 %v1720, %v1720
        %1727 = vrot.lane.b32.xlu0 %v1503, 8
        %v1728 = vpop.permute.xlu0 %1727
        %1730 = vrot.lane.b32.xlu0 %v1614, 16
        %v1731 = vpop.permute.xlu0 %1730
        %1733 = vrot.lane.b32.xlu0 %v1725, 24
        %v1734 = vpop.permute.xlu0 %1733
        %v1737 = vsel %vm818, %v1392, %v1728
        %v1739 = vsel %vm1272, %v1737, %v1731
        %v1741 = vsel %vm1275, %v1739, %v1734
        %v1743 = vrot.slane %v1741, 4
        %vm1745 = vcmask 261124
        %1746 = vst.msk [vmem:[#allocation4] sm:$0xf0] %vm1745, %v1743
        %v1747 = vld [vmem:[#allocation4] sm:$0xff]
        %v1748 = vld [vmem:[%s681] sm:$0xf]
        %v1749 = vld [vmem:[%s681 + $0x4] sm:$0xf]
        %v1750 = vld [vmem:[%s681 + $0x8] sm:$0xf]
        %v1751 = vld [vmem:[%s681 + $0xc] sm:$0xf]
        %v1752 = vld [vmem:[%s557] sm:$0x1]
        %v1754 = vlaneseq
        %v1755 = vshrl.u32 %v1754, 7
        %v1756 = vsub.s32 0, %v1755
        %v1757 = vrot.slane %v1752, %v1756
        %v1763 = vunpack.c.l.b16 %v1748
        %v1764 = vunpack.c.l.b16 %v1749
        %v1765 = vunpack.c.l.b16 %v1750
        %v1766 = vunpack.c.l.b16 %v1751
        %v1767 = vpack.c.b16 %v1764, %v1763
        %v1768 = vpack.c.b16 %v1766, %v1765
        %v1772 = vsel %vm704, %v1747, 0
        %1774 = vmatprep.subr.bf16.mxu0 0
        %1775 = vmatpush1.bf16.msra.mxu0 %v1767
        %1776 = vmatprep.subr.bf16.mxu0 0
        %1777 = vmatpush1.bf16.msra.mxu0 %v1768
        %1778 = vmatprep.subr.bf16.mxu0 0
        %1779 = vmatpush1.bf16.msra.mxu0 0
        %1780 = vmatprep.subr.bf16.mxu0 0
        %1781 = vmatpush1.bf16.msra.mxu0 0
        %1782 = vmatprep.subr.bf16.mxu0 0
        %1783 = vmatpush1.bf16.msra.mxu0 0
        %1784 = vmatprep.subr.bf16.mxu0 0
        %1785 = vmatpush1.bf16.msra.mxu0 0
        %1786 = vmatprep.subr.bf16.mxu0 0
        %1787 = vmatpush1.bf16.msra.mxu0 0
        %1788 = vmatprep.subr.bf16.mxu0 0
        %1789 = vmatpush1.bf16.msra.mxu0 0
        %1790 = vmatprep.subr.bf16.mxu0 0
        %1791 = vmatpush1.bf16.msra.mxu0 0
        %1792 = vmatprep.subr.bf16.mxu0 0
        %1793 = vmatpush1.bf16.msra.mxu0 0
        %1794 = vmatprep.subr.bf16.mxu0 0
        %1795 = vmatpush1.bf16.msra.mxu0 0
        %1796 = vmatprep.subr.bf16.mxu0 0
        %1797 = vmatpush1.bf16.msra.mxu0 0
        %1798 = vmatprep.subr.bf16.mxu0 0
        %1799 = vmatpush1.bf16.msra.mxu0 0
        %1800 = vmatprep.subr.bf16.mxu0 0
        %1801 = vmatpush1.bf16.msra.mxu0 0
        %1802 = vmatprep.subr.bf16.mxu0 0
        %1803 = vmatpush1.bf16.msra.mxu0 0
        %1804 = vmatprep.subr.bf16.mxu0 0
        %1805 = vmatpush1.bf16.msra.mxu0 0
        %1806 = vmatprep.mubr.bf16.mxu0 0
        %1807 = vmatmul.mubr.bf16.gmra.mrb[0].mxu0 %v1772
        %v1808 = vpop.f32.mrb[0].mxu0
        %v1809 = vadd.f32 %v1757, %v1808
        %v1810 = vpop.f32.mrb[0].mxu0
        %v1811 = vpop.f32.mrb[0].mxu0
        %v1812 = vadd.f32 %v1757, %v1811
        %v1813 = vpop.f32.mrb[0].mxu0
        %1814 = vdwg.mxu0
        %v1815 = vadd.f32 %v702, %v1809
        %v1816 = vadd.f32 %v703, %v1812
        %v1817 = vsel %vm704, %v1815, 0.0
        %1818 = vadd.xlane.f32.xlu0 %v1817
        %v1819 = vpop.xlane.xlu0 %1818
        %v1820 = vsel %vm704, %v1816, 0.0
        %1821 = vadd.xlane.f32.xlu0 %v1820
        %v1822 = vpop.xlane.xlu0 %1821
        %v1823 = vmul.f32 %v1819, %v711
        %v1824 = vmul.f32 %v1822, %v711
        %v1825 = vsub.f32 %v1815, %v1823
        %v1826 = vsub.f32 %v1816, %v1824
        %v1827 = vmul.f32 %v1825, %v1825
        %v1828 = vmul.f32 %v1826, %v1826
        %v1829 = vsel %vm704, %v1827, 0.0
        %1830 = vadd.xlane.f32.xlu0 %v1829
        %v1831 = vpop.xlane.xlu0 %1830
        %v1832 = vsel %vm704, %v1828, 0.0
        %1833 = vadd.xlane.f32.xlu0 %v1832
        %v1834 = vpop.xlane.xlu0 %1833
        %v1835 = vmul.f32 %v1831, %v711
        %v1836 = vmul.f32 %v1834, %v711
        %v1837 = vadd.f32 %v1835, 1e-05
        %v1838 = vadd.f32 %v1836, 1e-05
        %v1839 = vrsqrt.pop %v1837
        %v1840 = vrsqrt.pop %v1838
        %v1841 = vmul.f32 %v1825, %v1839
        %v1842 = vmul.f32 %v1826, %v1840
        %v1843 = vld [vmem:[%s565] sm:$0x1]
        %v1845 = vlaneseq
        %v1846 = vshrl.u32 %v1845, 7
        %v1847 = vsub.s32 0, %v1846
        %v1848 = vrot.slane %v1843, %v1847
        %v1850 = vmul.f32 %v1841, %v1848
        %v1851 = vmul.f32 %v1842, %v1848
        %v1852 = vld [vmem:[%s573] sm:$0x1]
        %v1854 = vlaneseq
        %v1855 = vshrl.u32 %v1854, 7
        %v1856 = vsub.s32 0, %v1855
        %v1857 = vrot.slane %v1852, %v1856
        %v1859 = vadd.f32 %v1850, %v1857
        %v1860 = vadd.f32 %v1851, %v1857
        %v1861 = vpack.c.bf16 %v1860, %v1859
        %v1862 = vld [vmem:[%s589] sm:$0x1]
        %v1864 = vlaneseq
        %v1865 = vshrl.u32 %v1864, 7
        %v1866 = vsub.s32 0, %v1865
        %v1867 = vrot.slane %v1862, %v1866
        %v1869 = vadd.f32 %v1815, %v1867
        %v1870 = vadd.f32 %v1816, %v1867
        %1871 = vst.msk [vmem:[#allocation2] sm:$0xff] %vm704, %v1869
        %1872 = vst.msk [vmem:[#allocation2 + $0x8] sm:$0xff] %vm704, %v1870
        %v1873 = vld [vmem:[%s581] sm:$0x1]
        %v1874 = vld [vmem:[%s686] sm:$0xf]
        %v1875 = vld [vmem:[%s686 + $0x4] sm:$0xf]
        %v1876 = vld [vmem:[%s686 + $0x8] sm:$0xf]
        %v1877 = vld [vmem:[%s686 + $0xc] sm:$0xf]
        %v1879 = vlaneseq
        %v1880 = vshrl.u32 %v1879, 7
        %v1881 = vsub.s32 0, %v1880
        %v1882 = vrot.slane %v1873, %v1881
        %v1888 = vunpack.c.l.b16 %v1874
        %v1889 = vunpack.c.l.b16 %v1875
        %v1890 = vunpack.c.l.b16 %v1876
        %v1891 = vunpack.c.l.b16 %v1877
        %v1892 = vpack.c.b16 %v1889, %v1888
        %v1893 = vpack.c.b16 %v1891, %v1890
        %v1897 = vsel %vm704, %v1861, 0
        %1899 = vmatprep.subr.bf16.mxu0 0
        %1900 = vmatpush1.bf16.msra.mxu0 %v1892
        %1901 = vmatprep.subr.bf16.mxu0 0
        %1902 = vmatpush1.bf16.msra.mxu0 %v1893
        %1903 = vmatprep.subr.bf16.mxu0 0
        %1904 = vmatpush1.bf16.msra.mxu0 0
        %1905 = vmatprep.subr.bf16.mxu0 0
        %1906 = vmatpush1.bf16.msra.mxu0 0
        %1907 = vmatprep.subr.bf16.mxu0 0
        %1908 = vmatpush1.bf16.msra.mxu0 0
        %1909 = vmatprep.subr.bf16.mxu0 0
        %1910 = vmatpush1.bf16.msra.mxu0 0
        %1911 = vmatprep.subr.bf16.mxu0 0
        %1912 = vmatpush1.bf16.msra.mxu0 0
        %1913 = vmatprep.subr.bf16.mxu0 0
        %1914 = vmatpush1.bf16.msra.mxu0 0
        %1915 = vmatprep.subr.bf16.mxu0 0
        %1916 = vmatpush1.bf16.msra.mxu0 0
        %1917 = vmatprep.subr.bf16.mxu0 0
        %1918 = vmatpush1.bf16.msra.mxu0 0
        %1919 = vmatprep.subr.bf16.mxu0 0
        %1920 = vmatpush1.bf16.msra.mxu0 0
        %1921 = vmatprep.subr.bf16.mxu0 0
        %1922 = vmatpush1.bf16.msra.mxu0 0
        %1923 = vmatprep.subr.bf16.mxu0 0
        %1924 = vmatpush1.bf16.msra.mxu0 0
        %1925 = vmatprep.subr.bf16.mxu0 0
        %1926 = vmatpush1.bf16.msra.mxu0 0
        %1927 = vmatprep.subr.bf16.mxu0 0
        %1928 = vmatpush1.bf16.msra.mxu0 0
        %1929 = vmatprep.subr.bf16.mxu0 0
        %1930 = vmatpush1.bf16.msra.mxu0 0
        %1931 = vmatprep.mubr.bf16.mxu0 0
        %1932 = vmatmul.mubr.bf16.gmra.mrb[0].mxu0 %v1897
        %v1933 = vpop.f32.mrb[0].mxu0
        %v1934 = vadd.f32 %v1882, %v1933
        %v1935 = vpop.f32.mrb[0].mxu0
        %v1936 = vpop.f32.mrb[0].mxu0
        %v1937 = vadd.f32 %v1882, %v1936
        %v1938 = vpop.f32.mrb[0].mxu0
        %1939 = vdwg.mxu0
        %v1940 = vmul.f32 %v1934, 0.5
        %v1941 = vmul.f32 %v1937, 0.5
        %v1942 = vmul.f32 %v1934, 0.70710677
        %v1943 = vmul.f32 %v1937, 0.70710677
        %v1944 = verf.f32.pop %v1942
        %v1945 = verf.f32.pop %v1943
        %v1946 = vadd.f32 %v1944, 1.0
        %v1947 = vadd.f32 %v1945, 1.0
        %v1948 = vmul.f32 %v1940, %v1946
        %v1949 = vmul.f32 %v1941, %v1947
        %v1950 = vld [vmem:[#allocation2] sm:$0xff]
        %v1951 = vld [vmem:[#allocation2 + $0x8] sm:$0xff]
        %v1952 = vpack.c.bf16 %v1949, %v1948
        %v1953 = vld [vmem:[%s691] sm:$0xf]
        %v1954 = vld [vmem:[%s691 + $0x4] sm:$0xf]
        %v1955 = vld [vmem:[%s691 + $0x8] sm:$0xf]
        %v1956 = vld [vmem:[%s691 + $0xc] sm:$0xf]
        %v1957 = vld [vmem:[%s691 + $0x10] sm:$0xf]
        %v1958 = vld [vmem:[%s691 + $0x14] sm:$0xf]
        %v1959 = vld [vmem:[%s691 + $0x18] sm:$0xf]
        %v1960 = vld [vmem:[%s691 + $0x1c] sm:$0xf]
        %v1969 = vunpack.c.l.b16 %v1953
        %v1970 = vunpack.c.l.b16 %v1954
        %v1971 = vunpack.c.l.b16 %v1955
        %v1972 = vunpack.c.l.b16 %v1956
        %v1973 = vunpack.c.l.b16 %v1957
        %v1974 = vunpack.c.l.b16 %v1958
        %v1975 = vunpack.c.l.b16 %v1959
        %v1976 = vunpack.c.l.b16 %v1960
        %v1977 = vpack.c.b16 %v1970, %v1969
        %v1978 = vpack.c.b16 %v1972, %v1971
        %v1979 = vpack.c.b16 %v1974, %v1973
        %v1980 = vpack.c.b16 %v1976, %v1975
        %vm1985 = vcmask 523264
        %v1987 = vsel %vm1985, %v1952, 0
        %1989 = vmatprep.subr.bf16.mxu0 0
        %1990 = vmatpush1.bf16.msra.mxu0 %v1977
        %1991 = vmatprep.subr.bf16.mxu0 0
        %1992 = vmatpush1.bf16.msra.mxu0 %v1978
        %1993 = vmatprep.subr.bf16.mxu0 0
        %1994 = vmatpush1.bf16.msra.mxu0 %v1979
        %1995 = vmatprep.subr.bf16.mxu0 0
        %1996 = vmatpush1.bf16.msra.mxu0 %v1980
        %1997 = vmatprep.subr.bf16.mxu0 0
        %1998 = vmatpush1.bf16.msra.mxu0 0
        %1999 = vmatprep.subr.bf16.mxu0 0
        %2000 = vmatpush1.bf16.msra.mxu0 0
        %2001 = vmatprep.subr.bf16.mxu0 0
        %2002 = vmatpush1.bf16.msra.mxu0 0
        %2003 = vmatprep.subr.bf16.mxu0 0
        %2004 = vmatpush1.bf16.msra.mxu0 0
        %2005 = vmatprep.subr.bf16.mxu0 0
        %2006 = vmatpush1.bf16.msra.mxu0 0
        %2007 = vmatprep.subr.bf16.mxu0 0
        %2008 = vmatpush1.bf16.msra.mxu0 0
        %2009 = vmatprep.subr.bf16.mxu0 0
        %2010 = vmatpush1.bf16.msra.mxu0 0
        %2011 = vmatprep.subr.bf16.mxu0 0
        %2012 = vmatpush1.bf16.msra.mxu0 0
        %2013 = vmatprep.subr.bf16.mxu0 0
        %2014 = vmatpush1.bf16.msra.mxu0 0
        %2015 = vmatprep.subr.bf16.mxu0 0
        %2016 = vmatpush1.bf16.msra.mxu0 0
        %2017 = vmatprep.subr.bf16.mxu0 0
        %2018 = vmatpush1.bf16.msra.mxu0 0
        %2019 = vmatprep.subr.bf16.mxu0 0
        %2020 = vmatpush1.bf16.msra.mxu0 0
        %2021 = vmatprep.mubr.bf16.mxu0 0
        %2022 = vmatmul.mubr.bf16.gmra.mrb[0].mxu0 %v1987
        %v2023 = vpop.f32.mrb[0].mxu0
        %v2024 = vadd.f32 0.0, %v2023
        %v2025 = vpop.f32.mrb[0].mxu0
        %v2026 = vpop.f32.mrb[0].mxu0
        %v2027 = vadd.f32 0.0, %v2026
        %v2028 = vpop.f32.mrb[0].mxu0
        %2029 = vdwg.mxu0
        %v2030 = vadd.f32 %v1950, %v2024
        %v2031 = vadd.f32 %v1951, %v2027
        %2032 = vst.msk [vmem:[#allocation2] sm:$0xff] %vm704, %v2030
        %2033 = vst.msk [vmem:[#allocation2 + $0x8] sm:$0xff] %vm704, %v2031
        %p2034 = scmp.eq.s32.totalorder %s39, 1
        // Predicated region
        $region97: #{transformer_forward.1} parent=67 // pred_check
          %p2035 = pneg %p2034
        $region98: #{transformer_forward.1} parent=67 // pred_check_branch
          %2037 = sbr.rel (%p2035) target = $region100
        $region99: #{transformer_forward.1} parent=67 // pred_region
          %v2038 = vld [vmem:[#allocation2] sm:$0xff]
          %v2039 = vld [vmem:[#allocation2 + $0x8] sm:$0xff]
          %2040 = vst.msk [vmem:[#allocation16] sm:$0xff] %vm704, %v2038
          %2041 = vst.msk [vmem:[#allocation16 + $0x8] sm:$0xff] %vm704, %v2039
        $region100: #{transformer_forward.1} parent=67 // pred_fallthru
          _
        // Predicated region
        $region101: #{transformer_forward.1} parent=67 // pred_check
          %p2042 = pneg %p376
        $region102: #{transformer_forward.1} parent=67 // pred_check_branch
          %2044 = sbr.rel (%p2042) target = $region104
        $region103: #{transformer_forward.1} parent=67 // pred_region
          %s2046 = ssub.s32 256, 256
          %2047 = vsyncadd [#allocation7], %s2046
          %s2048 = smul.addr %s38, 2
          %s2049 = smul.addr %s2048, 128
          %s2050 = scalar_lea.hbm %s12, %s2049
          %s2051 = sshll.u32 [#allocation16], 4
          %s2052 = int_to_ptr.vmem [resolvable:$true] %s2051
          %2057 = dma.vmem_to_hbm [thread:$0]  %s2052, 256, %s2050, [#allocation7], 128, 128, 8
        $region104: #{transformer_forward.1} parent=67 // pred_fallthru
          _
        // Predicated region
        $region105: #{transformer_forward.1} parent=67 // pred_check
          %p2058 = pneg %p376
        $region106: #{transformer_forward.1} parent=67 // pred_check_branch
          %2060 = sbr.rel (%p2058) target = $region108
        $region107: #{transformer_forward.1} parent=67 // pred_region
          %2061 = dma.done [#allocation7], 256
        $region108: #{transformer_forward.1} parent=67 // pred_fallthru
          _
      $region68: #{transformer_forward.1} parent=5 // pred_fallthru
        _
      %p2062 = scmp.le.s32.totalorder 2, %s29
      // Predicated region
      $region109: #{transformer_forward.1} parent=5 // pred_check
        %p2063 = pneg %p2062
      $region110: #{transformer_forward.1} parent=5 // pred_check_branch
        %2065 = sbr.rel (%p2063) target = $region112
      $region111: #{transformer_forward.1} parent=5 // pred_region
        %s2066 = ssub.s32 %s29, 2
      $region112: #{transformer_forward.1} parent=5 // pred_fallthru
        _
    $region6: #{transformer_forward.1} parent=1 // loop_footer
      %s33 = sadd.s32 1, %s29
    $region7: #{transformer_forward.1} parent=1 // loop_footer_branch
      %28 = sbr.rel target = $region3
    $region8: #{transformer_forward.1} parent=1 // loop_exit
      _
    %2067 = vsyncpa [#allocation6], 1
    %s2068 = scalar_lea.sflag [#allocation6], 1
    %2069 = vsyncpa %s2068, 1
    %2070 = vsyncpa [#allocation9], 1
    %s2071 = scalar_lea.sflag [#allocation9], 1
    %2072 = vsyncpa %s2071, 1
    %2073 = vsyncpa [#allocation12], 1
    %s2074 = scalar_lea.sflag [#allocation12], 1
    %2075 = vsyncpa %s2074, 1
    %2076 = vsyncpa [#allocation15], 1
    %s2077 = scalar_lea.sflag [#allocation15], 1
    %2078 = vsyncpa %s2077, 1
    %2079 = vsyncpa [#allocation7], 1
    %s2080 = scalar_lea.sflag [#allocation7], 1
    %2081 = vsyncpa %s2080, 1

</llo_original>
